<compile_context>
chip_gen: v6e
topology: v6e:2x2x1
jax: 0.10.0
libtpu: 0.0.40
codegen_flags: <defaults>
</compile_context>

<pallas_src>
import functools

import jax
import jax.numpy as jnp
from jax.experimental import pallas as pl
from jax.experimental.pallas import tpu as pltpu


def _round_up(n, m):
    return ((n + m - 1) // m) * m


# --------------------------------------------------------------------------- #
# Kernel
# --------------------------------------------------------------------------- #
def moe_kernel(x_ref, w_all_ref, b_all_ref, w_gate_ref, b_gate_ref,
               eid_ref, reduce_ref, out_ref, gate_sum_ref, *,
               batch, block_m, compute_dtype, approx_recip, exact_tiles):
    i = pl.program_id(0)
    x = x_ref[...]                                         # (TM, Din), f32
    tm = x.shape[0]
    e_pad = w_gate_ref.shape[-1]                           # gate lanes (>= num_experts)

    # ---------------- gate path (f32; feeds routing + 1e-5-tolerance aux loss) ----------------
    gate_logits = (jnp.dot(x, w_gate_ref[...], preferred_element_type=jnp.float32)
                   + b_gate_ref[...])                      # (TM, Epad); pad lanes ~ -1e30

    g_max = jnp.max(gate_logits, axis=-1, keepdims=True)
    g_exp = jnp.exp(gate_logits - g_max)
    gates = g_exp / jnp.sum(g_exp, axis=-1, keepdims=True)  # full softmax (f32)

    # Per-tile, row-masked sum of gates; importance/KL finalized in the wrapper so
    # the batch grid axis stays "parallel".
    if exact_tiles:
        tile_gate_sum = jnp.sum(gates, axis=0, keepdims=True)
    else:
        row = jax.lax.broadcasted_iota(jnp.int32, (tm, 1), 0) + i * block_m
        valid = (row < batch).astype(jnp.float32)
        tile_gate_sum = jnp.sum(gates * valid, axis=0, keepdims=True)
    gate_sum_ref[...] = tile_gate_sum[None]                # (1, 1, Epad)

    # ------------- top-2 routing (ties -> lowest index, like torch.topk) -------------
    col = jax.lax.broadcasted_iota(jnp.int32, gate_logits.shape, 1)
    m1 = g_max
    a1 = jnp.min(jnp.where(gate_logits == m1, col, e_pad), axis=-1, keepdims=True)
    masked = jnp.where(col == a1, -jnp.inf, gate_logits)
    m2 = jnp.max(masked, axis=-1, keepdims=True)
    a2 = jnp.min(jnp.where(masked == m2, col, e_pad), axis=-1, keepdims=True)

    # softmax over the two selected logits (m1 >= m2); approx recip rides the EUP slot.
    e2 = jnp.exp(m2 - m1)
    den = 1.0 + e2
    inv = pl.reciprocal(den, approx=True) if approx_recip else 1.0 / den
    w1 = inv                                               # (TM, 1)
    w2 = e2 * inv                                          # (TM, 1)

    # ---------------- fused, lane-dense expert matmul (one MXU op over all experts) ----------------
    y_all = (jnp.dot(x.astype(compute_dtype), w_all_ref[...],
                     preferred_element_type=jnp.float32)
             + b_all_ref[...])                             # (TM, NEpad), f32

    # Combine weights from the precomputed expert-id row (no per-element int divide).
    eid = eid_ref[...]                                     # (1, NEpad) int32, -1 on pad lanes
    combine = (w1 * (eid == a1).astype(jnp.float32)
               + w2 * (eid == a2).astype(jnp.float32))     # (TM, NEpad)

    # Slab reduce on the MXU (stacked identities); lane-dense (TM, DoutPad) output store.
    out_ref[...] = jnp.dot(y_all * combine, reduce_ref[...],
                           preferred_element_type=jnp.float32).astype(out_ref.dtype)


# --------------------------------------------------------------------------- #
# One-time parameter packing (do NOT redo this per forward call)
# --------------------------------------------------------------------------- #
def pack_moe_params(w_experts, b_experts, w_gate, b_gate, *,
                    compute_dtype=jnp.float32, lane_multiple=256):
    """Pack MoE parameters once into lane-padded fused operands for the kernel."""
    num_experts, d_in, d_out = w_experts.shape
    assert num_experts >= 2, "top-2 routing requires at least two experts"
    n_e = num_experts * d_out
    n_e_pad = _round_up(n_e, lane_multiple)   # 256-lane aligned (full v6e/v7x MXU pass)
    e_pad = _round_up(num_experts, 128)
    d_out_pad = _round_up(d_out, 128)         # lane-dense output block

    # Fused expert weights/bias: [W_0 | W_1 | ... | W_{E-1} | 0-pad].
    w_all = jnp.zeros((d_in, n_e_pad), compute_dtype).at[:, :n_e].set(
        jnp.transpose(w_experts, (1, 0, 2)).reshape(d_in, n_e).astype(compute_dtype))
    b_all = jnp.zeros((1, n_e_pad), jnp.float32).at[:, :n_e].set(
        b_experts.reshape(1, n_e).astype(jnp.float32))

    # Gate weights lane-padded to 128; padded logits pinned to -1e30 via the bias
    # (gate path stays f32, so -1e30 is representable and softmaxes to 0).
    w_gate_p = jnp.zeros((d_in, e_pad), jnp.float32).at[:, :num_experts].set(
        w_gate.astype(jnp.float32))
    b_gate_p = jnp.full((1, e_pad), -1e30, jnp.float32).at[:, :num_experts].set(
        b_gate.reshape(1, num_experts).astype(jnp.float32))

    # Expert-id per fused lane (-1 on pad lanes so it never matches a top-2 index).
    expert_id = jnp.full((1, n_e_pad), -1, jnp.int32).at[0, :n_e].set(
        jnp.repeat(jnp.arange(num_experts, dtype=jnp.int32), d_out))

    # Stacked-identity reduce matrix (pad rows are zero -> pad lanes never summed in).
    reduce_mat = jnp.zeros((n_e_pad, d_out_pad), jnp.float32).at[:n_e].set(
        jnp.tile(jnp.eye(d_out, d_out_pad, dtype=jnp.float32), (num_experts, 1)))

    return dict(w_all=w_all, b_all=b_all, w_gate=w_gate_p, b_gate=b_gate_p,
                expert_id=expert_id, reduce_mat=reduce_mat,
                num_experts=num_experts, d_in=d_in, d_out=d_out)


def _vmem_limit_bytes(tm, d_in, n_e_pad, e_pad, d_out_pad, w_itemsize):
    # Per-generation cap: ~56 MiB on v7x (64 MiB physical), ~100 MiB on v5e/v6e.
    cap = 100 << 20
    try:
        cap = min(int(pltpu.get_tpu_info().vmem_capacity_bytes) * 7 // 8, 100 << 20)
    except Exception:
        pass
    per_iter = (
        2 * tm * d_in * 4                                    # x tile (double-buffered)
        + d_in * n_e_pad * w_itemsize + n_e_pad * 4          # fused expert W/b (single-buffered)
        + d_in * e_pad * 4 + e_pad * 4                       # gate W/b
        + n_e_pad * 4 + n_e_pad * d_out_pad * 4              # expert-id row + reduce matrix
        + 2 * (tm * d_out_pad * 4 + e_pad * 4)               # outputs (double-buffered)
        + 6 * tm * n_e_pad * 4 + 4 * tm * e_pad * 4          # live f32/int32 temporaries
    )
    return max(min(per_iter + (16 << 20), cap), 32 << 20)


# --------------------------------------------------------------------------- #
# Forward pass
# --------------------------------------------------------------------------- #
def moe_layer_apply(x, packed, *, block_m=512, approx_recip=False):
    """Forward pass. Returns (output (B, Dout) f32, aux_loss scalar f32)."""
    batch, d_in = x.shape
    assert d_in == packed["d_in"]
    num_experts, d_out = packed["num_experts"], packed["d_out"]
    n_e_pad = packed["w_all"].shape[1]
    e_pad = packed["w_gate"].shape[1]
    d_out_pad = packed["reduce_mat"].shape[1]
    compute_dtype = packed["w_all"].dtype
    w_itemsize = packed["w_all"].dtype.itemsize

    # Batch tiling (pad rows so the grid divides evenly).
    tm = min(block_m, _round_up(batch, 8))
    b_pad = _round_up(batch, tm)
    x_p = x.astype(jnp.float32)
    if b_pad != batch:
        x_p = jnp.pad(x_p, ((0, b_pad - batch), (0, 0)))
    num_tiles = b_pad // tm
    exact_tiles = (batch % tm == 0)

    vmem_limit = _vmem_limit_bytes(tm, d_in, n_e_pad, e_pad, d_out_pad, w_itemsize)

    kernel = functools.partial(
        moe_kernel, batch=batch, block_m=tm, compute_dtype=compute_dtype,
        approx_recip=approx_recip, exact_tiles=exact_tiles)

    def build(single_buffer_weights):
        def inv_spec(shape):
            idx = lambda i: (0,) * len(shape)
            if single_buffer_weights:
                # Grid-invariant operand: keep ONE VMEM buffer instead of two.
                return pl.BlockSpec(shape, idx, pipeline_mode=pl.Buffered(1))
            return pl.BlockSpec(shape, idx)

        grid_spec = pltpu.PrefetchScalarGridSpec(
            num_scalar_prefetch=0,
            grid=(num_tiles,),
            in_specs=[
                pl.BlockSpec((tm, d_in), lambda i: (i, 0)),        # x tile (pipelined)
                inv_spec((d_in, n_e_pad)),                         # fused expert weights
                inv_spec((1, n_e_pad)),                            # fused expert biases
                inv_spec((d_in, e_pad)),                           # gate weights (padded)
                inv_spec((1, e_pad)),                              # gate bias (padded)
                inv_spec((1, n_e_pad)),                            # expert-id row
                inv_spec((n_e_pad, d_out_pad)),                    # stacked-identity reduce
            ],
            out_specs=(
                pl.BlockSpec((tm, d_out_pad), lambda i: (i, 0)),   # lane-dense output
                pl.BlockSpec((1, 1, e_pad), lambda i: (i, 0, 0)),  # per-tile gate sums
            ),
        )
        return pl.pallas_call(
            kernel,
            grid_spec=grid_spec,
            out_shape=(
                jax.ShapeDtypeStruct((b_pad, d_out_pad), jnp.float32),
                jax.ShapeDtypeStruct((num_tiles, 1, e_pad), jnp.float32),
            ),
            compiler_params=pltpu.CompilerParams(
                dimension_semantics=("parallel",),
                vmem_limit_bytes=vmem_limit,
            ),
        )

    args = (x_p, packed["w_all"], packed["b_all"], packed["w_gate"],
            packed["b_gate"], packed["expert_id"], packed["reduce_mat"])
    try:
        out_pad, gate_sums = build(single_buffer_weights=True)(*args)
    except Exception:
        # Fallback for JAX builds without BlockSpec pipeline_mode / Buffered(1) support.
        out_pad, gate_sums = build(single_buffer_weights=False)(*args)

    out = out_pad[:batch, :d_out]
    # Tiny cross-tile finalize of the load-balancing loss: KL(uniform || importance).
    importance = jnp.sum(gate_sums[:, 0, :num_experts], axis=0) / batch
    target = 1.0 / num_experts
    aux = jnp.sum(target * (jnp.log(target) - jnp.log(importance)))
    return out, aux


def moe_layer(x, w_experts, b_experts, w_gate, b_gate, *, top_k=2,
              block_m=512, compute_dtype=jnp.float32, approx_recip=False):
    """Convenience one-shot wrapper (packs per call; prefer pack_moe_params once)."""
    assert top_k == 2, "kernel implements the module's default top_k=2"
    packed = pack_moe_params(w_experts, b_experts, w_gate, b_gate,
                             compute_dtype=compute_dtype)
    return moe_layer_apply(x, packed, block_m=block_m, approx_recip=approx_recip)


# --------------------------------------------------------------------------- #
# Pure-JAX reference (mirrors the PyTorch forward)
# --------------------------------------------------------------------------- #
def moe_reference(x, w_experts, b_experts, w_gate, b_gate, *, top_k=2):
    num_experts = w_experts.shape[0]
    expert_outputs = jnp.einsum("bi,eio->beo", x, w_experts) + b_experts[:, 0][None]
    gate_logits = x @ w_gate + b_gate[0]
    gates = jax.nn.softmax(gate_logits, axis=-1)
    importance = gates.mean(axis=0)
    target = 1.0 / num_experts
    aux = jnp.sum(target * (jnp.log(target) - jnp.log(importance)))
    topk_logits, topk_idx = jax.lax.top_k(gate_logits, top_k)
    topk_w = jax.nn.softmax(topk_logits, axis=1)
    selected = jnp.take_along_axis(expert_outputs, topk_idx[:, :, None], axis=1)
    out = jnp.sum(topk_w[:, :, None] * selected, axis=1)
    return out, aux


if __name__ == "__main__":
    B, D_IN, D_OUT, E, K = 8, 32, 32, 4, 2

    key = jax.random.PRNGKey(0)
    k_x, k_we, k_be, k_wg, k_bg = jax.random.split(key, 5)
    bound = 1.0 / (D_IN ** 0.5)
    x = jax.random.normal(k_x, (B, D_IN), jnp.float32)
    w_experts = jax.random.uniform(k_we, (E, D_IN, D_OUT), jnp.float32, -bound, bound)
    b_experts = jax.random.uniform(k_be, (E, 1, D_OUT), jnp.float32, -bound, bound)
    w_gate = jax.random.uniform(k_wg, (D_IN, E), jnp.float32, -bound, bound)
    b_gate = jax.random.uniform(k_bg, (1, E), jnp.float32, -bound, bound)

    ref_out, ref_aux = moe_reference(x, w_experts, b_experts, w_gate, b_gate, top_k=K)

    # Precise path: f32 MXU operands, exact top-2 reciprocal (tight tolerance).
    packed_f32 = pack_moe_params(w_experts, b_experts, w_gate, b_gate,
                                 compute_dtype=jnp.float32)
    out, aux = moe_layer_apply(x, packed_f32, approx_recip=False)
    jax.block_until_ready((out, aux))
    assert jnp.allclose(out, ref_out, atol=1e-4, rtol=1e-4), "output mismatch (f32)"
    assert jnp.allclose(aux, ref_aux, atol=1e-5, rtol=1e-5), "aux loss mismatch (f32)"

    # Fast path: bf16 MXU operands (f32 accumulation) + EUP approx reciprocal.
    # Gate/routing/aux stay in f32, so only the expert values carry bf16 error.
    packed_bf16 = pack_moe_params(w_experts, b_experts, w_gate, b_gate,
                                  compute_dtype=jnp.bfloat16)
    out_fast, aux_fast = moe_layer_apply(x, packed_bf16, approx_recip=True)
    jax.block_until_ready((out_fast, aux_fast))
    assert jnp.allclose(out_fast, ref_out, atol=5e-2, rtol=5e-2), "output mismatch (bf16)"
    assert jnp.allclose(aux_fast, ref_aux, atol=1e-5, rtol=1e-5), "aux loss mismatch (bf16)"

    print("KERNEL_OK")
</pallas_src>

<mosaic_0001>
module attributes {stable_mosaic.version = 11 : i64} {
  func.func @moe_kernel(%arg0: i32, %arg1: memref<8x32xf32, #tpu.memory_space<vmem>>, %arg2: memref<32x256xf32, #tpu.memory_space<vmem>>, %arg3: memref<1x256xf32, #tpu.memory_space<vmem>>, %arg4: memref<32x128xf32, #tpu.memory_space<vmem>>, %arg5: memref<1x128xf32, #tpu.memory_space<vmem>>, %arg6: memref<1x256xi32, #tpu.memory_space<vmem>>, %arg7: memref<256x128xf32, #tpu.memory_space<vmem>>, %arg8: memref<8x128xf32, #tpu.memory_space<vmem>>, %arg9: memref<1x1x128xf32, #tpu.memory_space<vmem>>) attributes {dimension_semantics = [#tpu.dimension_semantics<parallel>], iteration_bounds = array<i64: 1>, scalar_prefetch = 0 : i64, scratch_operands = 0 : i64, tpu.core_type = #tpu.core_type<tc>, window_params = [{transform_indices = @transform_0, window_bounds = array<i64: 8, 32>}, {pipeline_mode = #tpu.pipeline_mode<synchronous>, transform_indices = @transform_1, window_bounds = array<i64: 32, 256>}, {pipeline_mode = #tpu.pipeline_mode<synchronous>, transform_indices = @transform_2, window_bounds = array<i64: 1, 256>}, {pipeline_mode = #tpu.pipeline_mode<synchronous>, transform_indices = @transform_3, window_bounds = array<i64: 32, 128>}, {pipeline_mode = #tpu.pipeline_mode<synchronous>, transform_indices = @transform_4, window_bounds = array<i64: 1, 128>}, {pipeline_mode = #tpu.pipeline_mode<synchronous>, transform_indices = @transform_5, window_bounds = array<i64: 1, 256>}, {pipeline_mode = #tpu.pipeline_mode<synchronous>, transform_indices = @transform_6, window_bounds = array<i64: 256, 128>}, {transform_indices = @transform_7, window_bounds = array<i64: 8, 128>}, {transform_indices = @transform_8, window_bounds = array<i64: 1, 1, 128>}]} {
    %c0 = arith.constant 0 : index
    %c0_0 = arith.constant 0 : index
    %0 = vector.load %arg1[%c0, %c0_0] : memref<8x32xf32, #tpu.memory_space<vmem>>, vector<8x32xf32>
    %c0_1 = arith.constant 0 : index
    %c0_2 = arith.constant 0 : index
    %1 = vector.load %arg4[%c0_1, %c0_2] : memref<32x128xf32, #tpu.memory_space<vmem>>, vector<32x128xf32>
    %cst = arith.constant dense<0.000000e+00> : vector<8x128xf32>
    %2 = tpu.matmul %0, %1, %cst {dimension_numbers = #tpu.dot_dimension_numbers<[1], [0], [0], [1], [0, 0, 1, 1], [], []>} : vector<8x32xf32>, vector<32x128xf32>, vector<8x128xf32> -> vector<8x128xf32>
    %c0_3 = arith.constant 0 : index
    %c0_4 = arith.constant 0 : index
    %3 = vector.load %arg5[%c0_3, %c0_4] : memref<1x128xf32, #tpu.memory_space<vmem>>, vector<1x128xf32>
    %4 = vector.broadcast %3 : vector<1x128xf32> to vector<8x128xf32>
    %5 = arith.addf %2, %4 : vector<8x128xf32>
    %cst_5 = arith.constant dense<0xFF800000> : vector<8xf32>
    %6 = vector.multi_reduction <maximumf>, %5, %cst_5 [1] : vector<8x128xf32> to vector<8xf32>
    %7 = vector.shape_cast %6 : vector<8xf32> to vector<8x1xf32>
    %8 = vector.broadcast %7 : vector<8x1xf32> to vector<8x128xf32>
    %9 = arith.subf %5, %8 : vector<8x128xf32>
    %10 = math.exp %9 : vector<8x128xf32>
    %cst_6 = arith.constant dense<0.000000e+00> : vector<8xf32>
    %11 = vector.multi_reduction <add>, %10, %cst_6 [1] : vector<8x128xf32> to vector<8xf32>
    %12 = vector.shape_cast %11 : vector<8xf32> to vector<8x1xf32>
    %13 = vector.broadcast %12 : vector<8x1xf32> to vector<8x128xf32>
    %14 = arith.divf %10, %13 : vector<8x128xf32>
    %cst_7 = arith.constant dense<0.000000e+00> : vector<128xf32>
    %15 = vector.multi_reduction <add>, %14, %cst_7 [0] : vector<8x128xf32> to vector<128xf32>
    %16 = vector.shape_cast %15 : vector<128xf32> to vector<1x128xf32>
    %17 = vector.shape_cast %16 : vector<1x128xf32> to vector<1x1x128xf32>
    %c0_8 = arith.constant 0 : index
    %c0_9 = arith.constant 0 : index
    %c0_10 = arith.constant 0 : index
    %18 = vector.load %arg9[%c0_8, %c0_9, %c0_10] : memref<1x1x128xf32, #tpu.memory_space<vmem>>, vector<1x1x128xf32>
    tpu.vector_store %arg9[%c0_8, %c0_9, %c0_10], %17 {strides = array<i32>} : memref<1x1x128xf32, #tpu.memory_space<vmem>>, vector<1x1x128xf32>,
    %19 = tpu.iota {dimensions = array<i32: 1>} : vector<8x128xi32>
    %20 = vector.broadcast %7 : vector<8x1xf32> to vector<8x128xf32>
    %21 = arith.cmpf oeq, %5, %20 : vector<8x128xf32>
    %c128_i32 = arith.constant 128 : i32
    %22 = vector.broadcast %c128_i32 : i32 to vector<8x128xi32>
    %23 = arith.select %21, %19, %22 : vector<8x128xi1>, vector<8x128xi32>
    %cst_11 = arith.constant dense<2147483647> : vector<8xi32>
    %24 = vector.multi_reduction <minsi>, %23, %cst_11 [1] : vector<8x128xi32> to vector<8xi32>
    %25 = vector.shape_cast %24 : vector<8xi32> to vector<8x1xi32>
    %26 = vector.broadcast %25 : vector<8x1xi32> to vector<8x128xi32>
    %27 = arith.cmpi eq, %19, %26 : vector<8x128xi32>
    %cst_12 = arith.constant 0xFF800000 : f32
    %28 = vector.broadcast %cst_12 : f32 to vector<8x128xf32>
    %29 = arith.select %27, %28, %5 : vector<8x128xi1>, vector<8x128xf32>
    %cst_13 = arith.constant dense<0xFF800000> : vector<8xf32>
    %30 = vector.multi_reduction <maximumf>, %29, %cst_13 [1] : vector<8x128xf32> to vector<8xf32>
    %31 = vector.shape_cast %30 : vector<8xf32> to vector<8x1xf32>
    %32 = vector.broadcast %31 : vector<8x1xf32> to vector<8x128xf32>
    %33 = arith.cmpf oeq, %29, %32 : vector<8x128xf32>
    %c128_i32_14 = arith.constant 128 : i32
    %34 = vector.broadcast %c128_i32_14 : i32 to vector<8x128xi32>
    %35 = arith.select %33, %19, %34 : vector<8x128xi1>, vector<8x128xi32>
    %cst_15 = arith.constant dense<2147483647> : vector<8xi32>
    %36 = vector.multi_reduction <minsi>, %35, %cst_15 [1] : vector<8x128xi32> to vector<8xi32>
    %37 = vector.shape_cast %36 : vector<8xi32> to vector<8x1xi32>
    %38 = arith.subf %31, %7 : vector<8x1xf32>
    %39 = math.exp %38 : vector<8x1xf32>
    %cst_16 = arith.constant 1.000000e+00 : f32
    %40 = vector.broadcast %cst_16 : f32 to vector<8x1xf32>
    %41 = arith.addf %40, %39 : vector<8x1xf32>
    %cst_17 = arith.constant 1.000000e+00 : f32
    %42 = vector.broadcast %cst_17 : f32 to vector<8x1xf32>
    %43 = arith.divf %42, %41 : vector<8x1xf32>
    %44 = arith.mulf %39, %43 : vector<8x1xf32>
    %c0_18 = arith.constant 0 : index
    %c0_19 = arith.constant 0 : index
    %45 = vector.load %arg2[%c0_18, %c0_19] : memref<32x256xf32, #tpu.memory_space<vmem>>, vector<32x256xf32>
    %cst_20 = arith.constant dense<0.000000e+00> : vector<8x256xf32>
    %46 = tpu.matmul %0, %45, %cst_20 {dimension_numbers = #tpu.dot_dimension_numbers<[1], [0], [0], [1], [0, 0, 1, 1], [], []>} : vector<8x32xf32>, vector<32x256xf32>, vector<8x256xf32> -> vector<8x256xf32>
    %c0_21 = arith.constant 0 : index
    %c0_22 = arith.constant 0 : index
    %47 = vector.load %arg3[%c0_21, %c0_22] : memref<1x256xf32, #tpu.memory_space<vmem>>, vector<1x256xf32>
    %48 = vector.broadcast %47 : vector<1x256xf32> to vector<8x256xf32>
    %49 = arith.addf %46, %48 : vector<8x256xf32>
    %c0_23 = arith.constant 0 : index
    %c0_24 = arith.constant 0 : index
    %50 = vector.load %arg6[%c0_23, %c0_24] : memref<1x256xi32, #tpu.memory_space<vmem>>, vector<1x256xi32>
    %51 = vector.broadcast %50 : vector<1x256xi32> to vector<8x256xi32>
    %52 = vector.broadcast %25 : vector<8x1xi32> to vector<8x256xi32>
    %53 = arith.cmpi eq, %51, %52 : vector<8x256xi32>
    %54 = arith.extui %53 : vector<8x256xi1> to vector<8x256xi32>
    %55 = arith.sitofp %54 : vector<8x256xi32> to vector<8x256xf32>
    %56 = vector.broadcast %43 : vector<8x1xf32> to vector<8x256xf32>
    %57 = arith.mulf %56, %55 : vector<8x256xf32>
    %58 = vector.broadcast %50 : vector<1x256xi32> to vector<8x256xi32>
    %59 = vector.broadcast %37 : vector<8x1xi32> to vector<8x256xi32>
    %60 = arith.cmpi eq, %58, %59 : vector<8x256xi32>
    %61 = arith.extui %60 : vector<8x256xi1> to vector<8x256xi32>
    %62 = arith.sitofp %61 : vector<8x256xi32> to vector<8x256xf32>
    %63 = vector.broadcast %44 : vector<8x1xf32> to vector<8x256xf32>
    %64 = arith.mulf %63, %62 : vector<8x256xf32>
    %65 = arith.addf %57, %64 : vector<8x256xf32>
    %66 = arith.mulf %49, %65 : vector<8x256xf32>
    %c0_25 = arith.constant 0 : index
    %c0_26 = arith.constant 0 : index
    %67 = vector.load %arg7[%c0_25, %c0_26] : memref<256x128xf32, #tpu.memory_space<vmem>>, vector<256x128xf32>
    %cst_27 = arith.constant dense<0.000000e+00> : vector<8x128xf32>
    %68 = tpu.matmul %66, %67, %cst_27 {dimension_numbers = #tpu.dot_dimension_numbers<[1], [0], [0], [1], [0, 0, 1, 1], [], []>} : vector<8x256xf32>, vector<256x128xf32>, vector<8x128xf32> -> vector<8x128xf32>
    %c0_28 = arith.constant 0 : index
    %c0_29 = arith.constant 0 : index
    %69 = vector.load %arg8[%c0_28, %c0_29] : memref<8x128xf32, #tpu.memory_space<vmem>>, vector<8x128xf32>
    tpu.vector_store %arg8[%c0_28, %c0_29], %68 {strides = array<i32>} : memref<8x128xf32, #tpu.memory_space<vmem>>, vector<8x128xf32>,
    return
  }
  func.func @transform_0(%arg0: i32) -> (i32, i32) {
    %c0_i32 = arith.constant 0 : i32
    %c0_i32_0 = arith.constant 0 : i32
    return %arg0, %c0_i32 : i32, i32
  }
  func.func @transform_1(%arg0: i32) -> (i32, i32) {
    %c0_i32 = arith.constant 0 : i32
    %c0_i32_0 = arith.constant 0 : i32
    %c0_i32_1 = arith.constant 0 : i32
    return %c0_i32, %c0_i32_0 : i32, i32
  }
  func.func @transform_2(%arg0: i32) -> (i32, i32) {
    %c0_i32 = arith.constant 0 : i32
    %c0_i32_0 = arith.constant 0 : i32
    %c0_i32_1 = arith.constant 0 : i32
    return %c0_i32, %c0_i32_0 : i32, i32
  }
  func.func @transform_3(%arg0: i32) -> (i32, i32) {
    %c0_i32 = arith.constant 0 : i32
    %c0_i32_0 = arith.constant 0 : i32
    %c0_i32_1 = arith.constant 0 : i32
    return %c0_i32, %c0_i32_0 : i32, i32
  }
  func.func @transform_4(%arg0: i32) -> (i32, i32) {
    %c0_i32 = arith.constant 0 : i32
    %c0_i32_0 = arith.constant 0 : i32
    %c0_i32_1 = arith.constant 0 : i32
    return %c0_i32, %c0_i32_0 : i32, i32
  }
  func.func @transform_5(%arg0: i32) -> (i32, i32) {
    %c0_i32 = arith.constant 0 : i32
    %c0_i32_0 = arith.constant 0 : i32
    %c0_i32_1 = arith.constant 0 : i32
    return %c0_i32, %c0_i32_0 : i32, i32
  }
  func.func @transform_6(%arg0: i32) -> (i32, i32) {
    %c0_i32 = arith.constant 0 : i32
    %c0_i32_0 = arith.constant 0 : i32
    %c0_i32_1 = arith.constant 0 : i32
    return %c0_i32, %c0_i32_0 : i32, i32
  }
  func.func @transform_7(%arg0: i32) -> (i32, i32) {
    %c0_i32 = arith.constant 0 : i32
    %c0_i32_0 = arith.constant 0 : i32
    return %arg0, %c0_i32 : i32, i32
  }
  func.func @transform_8(%arg0: i32) -> (i32, i32, i32) {
    %c0_i32 = arith.constant 0 : i32
    %c0_i32_0 = arith.constant 0 : i32
    %c0_i32_1 = arith.constant 0 : i32
    return %arg0, %c0_i32, %c0_i32_0 : i32, i32, i32
  }
}

module attributes {stable_mosaic.version = 11 : i64} {
  func.func @moe_kernel(%arg0: i32, %arg1: memref<8x32xf32, #tpu.memory_space<vmem>>, %arg2: memref<32x256xf32, #tpu.memory_space<vmem>>, %arg3: memref<1x256xf32, #tpu.memory_space<vmem>>, %arg4: memref<32x128xf32, #tpu.memory_space<vmem>>, %arg5: memref<1x128xf32, #tpu.memory_space<vmem>>, %arg6: memref<1x256xi32, #tpu.memory_space<vmem>>, %arg7: memref<256x128xf32, #tpu.memory_space<vmem>>, %arg8: memref<8x128xf32, #tpu.memory_space<vmem>>, %arg9: memref<1x1x128xf32, #tpu.memory_space<vmem>>) attributes {dimension_semantics = [#tpu.dimension_semantics<parallel>], iteration_bounds = array<i64: 1>, scalar_prefetch = 0 : i64, scratch_operands = 0 : i64, tpu.core_type = #tpu.core_type<tc>, window_params = [{transform_indices = @transform_0, window_bounds = array<i64: 8, 32>}, {pipeline_mode = #tpu.pipeline_mode<synchronous>, transform_indices = @transform_1, window_bounds = array<i64: 32, 256>}, {pipeline_mode = #tpu.pipeline_mode<synchronous>, transform_indices = @transform_2, window_bounds = array<i64: 1, 256>}, {pipeline_mode = #tpu.pipeline_mode<synchronous>, transform_indices = @transform_3, window_bounds = array<i64: 32, 128>}, {pipeline_mode = #tpu.pipeline_mode<synchronous>, transform_indices = @transform_4, window_bounds = array<i64: 1, 128>}, {pipeline_mode = #tpu.pipeline_mode<synchronous>, transform_indices = @transform_5, window_bounds = array<i64: 1, 256>}, {pipeline_mode = #tpu.pipeline_mode<synchronous>, transform_indices = @transform_6, window_bounds = array<i64: 256, 128>}, {transform_indices = @transform_7, window_bounds = array<i64: 8, 128>}, {transform_indices = @transform_8, window_bounds = array<i64: 1, 1, 128>}]} {
    %c0 = arith.constant 0 : index
    %c0_0 = arith.constant 0 : index
    %0 = vector.load %arg1[%c0, %c0_0] : memref<8x32xf32, #tpu.memory_space<vmem>>, vector<8x32xf32>
    %c0_1 = arith.constant 0 : index
    %c0_2 = arith.constant 0 : index
    %1 = vector.load %arg4[%c0_1, %c0_2] : memref<32x128xf32, #tpu.memory_space<vmem>>, vector<32x128xf32>
    %cst = arith.constant dense<0.000000e+00> : vector<8x128xf32>
    %2 = tpu.matmul %0, %1, %cst {dimension_numbers = #tpu.dot_dimension_numbers<[1], [0], [0], [1], [0, 0, 1, 1], [], []>} : vector<8x32xf32>, vector<32x128xf32>, vector<8x128xf32> -> vector<8x128xf32>
    %c0_3 = arith.constant 0 : index
    %c0_4 = arith.constant 0 : index
    %3 = vector.load %arg5[%c0_3, %c0_4] : memref<1x128xf32, #tpu.memory_space<vmem>>, vector<1x128xf32>
    %4 = vector.broadcast %3 : vector<1x128xf32> to vector<8x128xf32>
    %5 = arith.addf %2, %4 : vector<8x128xf32>
    %cst_5 = arith.constant dense<0xFF800000> : vector<8xf32>
    %6 = vector.multi_reduction <maximumf>, %5, %cst_5 [1] : vector<8x128xf32> to vector<8xf32>
    %7 = vector.shape_cast %6 : vector<8xf32> to vector<8x1xf32>
    %8 = vector.broadcast %7 : vector<8x1xf32> to vector<8x128xf32>
    %9 = arith.subf %5, %8 : vector<8x128xf32>
    %10 = math.exp %9 : vector<8x128xf32>
    %cst_6 = arith.constant dense<0.000000e+00> : vector<8xf32>
    %11 = vector.multi_reduction <add>, %10, %cst_6 [1] : vector<8x128xf32> to vector<8xf32>
    %12 = vector.shape_cast %11 : vector<8xf32> to vector<8x1xf32>
    %13 = vector.broadcast %12 : vector<8x1xf32> to vector<8x128xf32>
    %14 = arith.divf %10, %13 : vector<8x128xf32>
    %cst_7 = arith.constant dense<0.000000e+00> : vector<128xf32>
    %15 = vector.multi_reduction <add>, %14, %cst_7 [0] : vector<8x128xf32> to vector<128xf32>
    %16 = vector.shape_cast %15 : vector<128xf32> to vector<1x128xf32>
    %17 = vector.shape_cast %16 : vector<1x128xf32> to vector<1x1x128xf32>
    %c0_8 = arith.constant 0 : index
    %c0_9 = arith.constant 0 : index
    %c0_10 = arith.constant 0 : index
    %18 = vector.load %arg9[%c0_8, %c0_9, %c0_10] : memref<1x1x128xf32, #tpu.memory_space<vmem>>, vector<1x1x128xf32>
    tpu.vector_store %arg9[%c0_8, %c0_9, %c0_10], %17 {strides = array<i32>} : memref<1x1x128xf32, #tpu.memory_space<vmem>>, vector<1x1x128xf32>,
    %19 = tpu.iota {dimensions = array<i32: 1>} : vector<8x128xi32>
    %20 = vector.broadcast %7 : vector<8x1xf32> to vector<8x128xf32>
    %21 = arith.cmpf oeq, %5, %20 : vector<8x128xf32>
    %c128_i32 = arith.constant 128 : i32
    %22 = vector.broadcast %c128_i32 : i32 to vector<8x128xi32>
    %23 = arith.select %21, %19, %22 : vector<8x128xi1>, vector<8x128xi32>
    %cst_11 = arith.constant dense<2147483647> : vector<8xi32>
    %24 = vector.multi_reduction <minsi>, %23, %cst_11 [1] : vector<8x128xi32> to vector<8xi32>
    %25 = vector.shape_cast %24 : vector<8xi32> to vector<8x1xi32>
    %26 = vector.broadcast %25 : vector<8x1xi32> to vector<8x128xi32>
    %27 = arith.cmpi eq, %19, %26 : vector<8x128xi32>
    %cst_12 = arith.constant 0xFF800000 : f32
    %28 = vector.broadcast %cst_12 : f32 to vector<8x128xf32>
    %29 = arith.select %27, %28, %5 : vector<8x128xi1>, vector<8x128xf32>
    %cst_13 = arith.constant dense<0xFF800000> : vector<8xf32>
    %30 = vector.multi_reduction <maximumf>, %29, %cst_13 [1] : vector<8x128xf32> to vector<8xf32>
    %31 = vector.shape_cast %30 : vector<8xf32> to vector<8x1xf32>
    %32 = vector.broadcast %31 : vector<8x1xf32> to vector<8x128xf32>
    %33 = arith.cmpf oeq, %29, %32 : vector<8x128xf32>
    %c128_i32_14 = arith.constant 128 : i32
    %34 = vector.broadcast %c128_i32_14 : i32 to vector<8x128xi32>
    %35 = arith.select %33, %19, %34 : vector<8x128xi1>, vector<8x128xi32>
    %cst_15 = arith.constant dense<2147483647> : vector<8xi32>
    %36 = vector.multi_reduction <minsi>, %35, %cst_15 [1] : vector<8x128xi32> to vector<8xi32>
    %37 = vector.shape_cast %36 : vector<8xi32> to vector<8x1xi32>
    %38 = arith.subf %31, %7 : vector<8x1xf32>
    %39 = math.exp %38 : vector<8x1xf32>
    %cst_16 = arith.constant 1.000000e+00 : f32
    %40 = vector.broadcast %cst_16 : f32 to vector<8x1xf32>
    %41 = arith.addf %40, %39 : vector<8x1xf32>
    %cst_17 = arith.constant 1.000000e+00 : f32
    %42 = vector.broadcast %cst_17 : f32 to vector<8x1xf32>
    %43 = arith.divf %42, %41 : vector<8x1xf32>
    %44 = arith.mulf %39, %43 : vector<8x1xf32>
    %c0_18 = arith.constant 0 : index
    %c0_19 = arith.constant 0 : index
    %45 = vector.load %arg2[%c0_18, %c0_19] : memref<32x256xf32, #tpu.memory_space<vmem>>, vector<32x256xf32>
    %cst_20 = arith.constant dense<0.000000e+00> : vector<8x256xf32>
    %46 = tpu.matmul %0, %45, %cst_20 {dimension_numbers = #tpu.dot_dimension_numbers<[1], [0], [0], [1], [0, 0, 1, 1], [], []>} : vector<8x32xf32>, vector<32x256xf32>, vector<8x256xf32> -> vector<8x256xf32>
    %c0_21 = arith.constant 0 : index
    %c0_22 = arith.constant 0 : index
    %47 = vector.load %arg3[%c0_21, %c0_22] : memref<1x256xf32, #tpu.memory_space<vmem>>, vector<1x256xf32>
    %48 = vector.broadcast %47 : vector<1x256xf32> to vector<8x256xf32>
    %49 = arith.addf %46, %48 : vector<8x256xf32>
    %c0_23 = arith.constant 0 : index
    %c0_24 = arith.constant 0 : index
    %50 = vector.load %arg6[%c0_23, %c0_24] : memref<1x256xi32, #tpu.memory_space<vmem>>, vector<1x256xi32>
    %51 = vector.broadcast %50 : vector<1x256xi32> to vector<8x256xi32>
    %52 = vector.broadcast %25 : vector<8x1xi32> to vector<8x256xi32>
    %53 = arith.cmpi eq, %51, %52 : vector<8x256xi32>
    %54 = arith.extui %53 : vector<8x256xi1> to vector<8x256xi32>
    %55 = arith.sitofp %54 : vector<8x256xi32> to vector<8x256xf32>
    %56 = vector.broadcast %43 : vector<8x1xf32> to vector<8x256xf32>
    %57 = arith.mulf %56, %55 : vector<8x256xf32>
    %58 = vector.broadcast %50 : vector<1x256xi32> to vector<8x256xi32>
    %59 = vector.broadcast %37 : vector<8x1xi32> to vector<8x256xi32>
    %60 = arith.cmpi eq, %58, %59 : vector<8x256xi32>
    %61 = arith.extui %60 : vector<8x256xi1> to vector<8x256xi32>
    %62 = arith.sitofp %61 : vector<8x256xi32> to vector<8x256xf32>
    %63 = vector.broadcast %44 : vector<8x1xf32> to vector<8x256xf32>
    %64 = arith.mulf %63, %62 : vector<8x256xf32>
    %65 = arith.addf %57, %64 : vector<8x256xf32>
    %66 = arith.mulf %49, %65 : vector<8x256xf32>
    %c0_25 = arith.constant 0 : index
    %c0_26 = arith.constant 0 : index
    %67 = vector.load %arg7[%c0_25, %c0_26] : memref<256x128xf32, #tpu.memory_space<vmem>>, vector<256x128xf32>
    %cst_27 = arith.constant dense<0.000000e+00> : vector<8x128xf32>
    %68 = tpu.matmul %66, %67, %cst_27 {dimension_numbers = #tpu.dot_dimension_numbers<[1], [0], [0], [1], [0, 0, 1, 1], [], []>} : vector<8x256xf32>, vector<256x128xf32>, vector<8x128xf32> -> vector<8x128xf32>
    %c0_28 = arith.constant 0 : index
    %c0_29 = arith.constant 0 : index
    %69 = vector.load %arg8[%c0_28, %c0_29] : memref<8x128xf32, #tpu.memory_space<vmem>>, vector<8x128xf32>
    tpu.vector_store %arg8[%c0_28, %c0_29], %68 {strides = array<i32>} : memref<8x128xf32, #tpu.memory_space<vmem>>, vector<8x128xf32>,
    return
  }
  func.func @transform_0(%arg0: i32) -> (i32, i32) {
    %c0_i32 = arith.constant 0 : i32
    %c0_i32_0 = arith.constant 0 : i32
    return %arg0, %c0_i32 : i32, i32
  }
  func.func @transform_1(%arg0: i32) -> (i32, i32) {
    %c0_i32 = arith.constant 0 : i32
    %c0_i32_0 = arith.constant 0 : i32
    %c0_i32_1 = arith.constant 0 : i32
    return %c0_i32, %c0_i32_0 : i32, i32
  }
  func.func @transform_2(%arg0: i32) -> (i32, i32) {
    %c0_i32 = arith.constant 0 : i32
    %c0_i32_0 = arith.constant 0 : i32
    %c0_i32_1 = arith.constant 0 : i32
    return %c0_i32, %c0_i32_0 : i32, i32
  }
  func.func @transform_3(%arg0: i32) -> (i32, i32) {
    %c0_i32 = arith.constant 0 : i32
    %c0_i32_0 = arith.constant 0 : i32
    %c0_i32_1 = arith.constant 0 : i32
    return %c0_i32, %c0_i32_0 : i32, i32
  }
  func.func @transform_4(%arg0: i32) -> (i32, i32) {
    %c0_i32 = arith.constant 0 : i32
    %c0_i32_0 = arith.constant 0 : i32
    %c0_i32_1 = arith.constant 0 : i32
    return %c0_i32, %c0_i32_0 : i32, i32
  }
  func.func @transform_5(%arg0: i32) -> (i32, i32) {
    %c0_i32 = arith.constant 0 : i32
    %c0_i32_0 = arith.constant 0 : i32
    %c0_i32_1 = arith.constant 0 : i32
    return %c0_i32, %c0_i32_0 : i32, i32
  }
  func.func @transform_6(%arg0: i32) -> (i32, i32) {
    %c0_i32 = arith.constant 0 : i32
    %c0_i32_0 = arith.constant 0 : i32
    %c0_i32_1 = arith.constant 0 : i32
    return %c0_i32, %c0_i32_0 : i32, i32
  }
  func.func @transform_7(%arg0: i32) -> (i32, i32) {
    %c0_i32 = arith.constant 0 : i32
    %c0_i32_0 = arith.constant 0 : i32
    return %arg0, %c0_i32 : i32, i32
  }
  func.func @transform_8(%arg0: i32) -> (i32, i32, i32) {
    %c0_i32 = arith.constant 0 : i32
    %c0_i32_0 = arith.constant 0 : i32
    %c0_i32_1 = arith.constant 0 : i32
    return %arg0, %c0_i32, %c0_i32_0 : i32, i32, i32
  }
}

</mosaic_0001>

<llo_original>
// kernel: tpu_custom_call.1
$region0: #{tpu_custom_call.1}
  #allocation0 [shape = 'u32[]', space=smem, size = 0x4, offset = 0x4, fixed_abs, tag = 'smem constant byte address 0x4 - core index']
  #allocation1 [shape = 'u32[144,128]{1,0:T(1,128)}', space=vmem, size = 0x12000, scoped, tag = 'internal scratch']
  %s0 = inlined_call_operand.hbm [shape: f32[8,32], index: 0, kind: input, shape index: {}]
  %s1 = inlined_call_operand.hbm [shape: f32[32,256], index: 1, kind: input, shape index: {}]
  %s2 = inlined_call_operand.vmem [shape: f32[1,256], index: 2, kind: input, shape index: {}]
  %s3 = inlined_call_operand.hbm [shape: f32[32,128], index: 3, kind: input, shape index: {}]
  %s4 = inlined_call_operand.vmem [shape: f32[1,128], index: 4, kind: input, shape index: {}]
  %s5 = inlined_call_operand.vmem [shape: s32[1,256], index: 5, kind: input, shape index: {}]
  %s6 = inlined_call_operand.hbm [shape: f32[256,128], index: 6, kind: input, shape index: {}]
  %s7 = inlined_call_operand.hbm [shape: f32[8,128], index: 7, kind: output, shape index: {0}]
  %s8 = inlined_call_operand.hbm [shape: f32[1,1,128], index: 8, kind: output, shape index: {1}]
  %9 = xla_tuple %s7, %s8
  %s10 = sld [smem:[#allocation0]]
  $region62: #{tpu_custom_call.1} parent=0
    _
  %s12 = ssub.s32 1, %s10
  %s13 = scalar_select 0, %s12, %s10
  $region1: #{tpu_custom_call.1} parent=0
    #allocation2 [shape = 'u8[4096]{0}', space=vmem, size = 0x1000, scoped, tag = 'input window, operand 0, single buffered']
    #allocation3 [shape = 's32[1]{0}', space=sflag, size = 0x4, scoped, tag = 'scoped memory for tpu_custom_call.1']
    #allocation4 [shape = 's32[1]{0}', space=sflag, size = 0x4, scoped, tag = 'scoped memory for tpu_custom_call.1']
    #allocation5 [shape = 'u8[32768]{0}', space=vmem, size = 0x8000, scoped, tag = 'input window, operand 1, single buffered']
    #allocation6 [shape = 's32[1]{0}', space=sflag, size = 0x4, scoped, tag = 'scoped memory for tpu_custom_call.1']
    #allocation7 [shape = 'u8[16384]{0}', space=vmem, size = 0x4000, scoped, tag = 'input window, operand 3, single buffered']
    #allocation8 [shape = 'u8[131072]{0}', space=vmem, size = 0x20000, scoped, tag = 'input window, operand 6, single buffered']
    #allocation9 [shape = 's32[1]{0}', space=sflag, size = 0x4, scoped, tag = 'scoped memory for tpu_custom_call.1']
    #allocation10 [shape = 'u8[4096]{0}', space=vmem, size = 0x1000, scoped, tag = 'output window, operand 0, single buffered']
    #allocation11 [shape = 'u8[512]{0}', space=vmem, size = 0x400, scoped, tag = 'output window, operand 1, single buffered']
    #allocation12 [shape = 's32[1]{0}', space=sflag, size = 0x4, scoped, tag = 'scoped memory for tpu_custom_call.1']
    %14 = vsyncpa [#allocation3], 0
    %15 = vsyncpa [#allocation6], 0
    %16 = vsyncpa [#allocation9], 0
    %17 = vsyncpa [#allocation4], 0
    %18 = vsyncpa [#allocation12], 0
    // Predicated region
    $region2: #{tpu_custom_call.1} parent=1 // pred_check
      _
    $region3: #{tpu_custom_call.1} parent=1 // pred_check_branch
      %20 = sbr.rel (0) target = $region5
    $region4: #{tpu_custom_call.1} parent=1 // pred_region
      %s22 = ssub.s32 128, 128
      %23 = vsyncadd [#allocation3], %s22
      %s25 = sshll.u32 [#allocation2], 4
      %s26 = int_to_ptr.vmem [resolvable:$true] %s25
      %28 = dma.hbm_to_vmem [thread:$0]  %s0, 128, %s26, [#allocation3]
    $region5: #{tpu_custom_call.1} parent=1 // pred_fallthru
      _
    // Predicated region
    $region6: #{tpu_custom_call.1} parent=1 // pred_check
      _
    $region7: #{tpu_custom_call.1} parent=1 // pred_check_branch
      %30 = sbr.rel (0) target = $region9
    $region8: #{tpu_custom_call.1} parent=1 // pred_region
      %s32 = ssub.s32 1024, 1024
      %33 = vsyncadd [#allocation6], %s32
      %s34 = sshll.u32 [#allocation5], 4
      %s35 = int_to_ptr.vmem [resolvable:$true] %s34
      %40 = dma.hbm_to_vmem [thread:$0]  %s1, 1024, %s35, [#allocation6], 256, 256, 16
    $region9: #{tpu_custom_call.1} parent=1 // pred_fallthru
      _
    // Predicated region
    $region10: #{tpu_custom_call.1} parent=1 // pred_check
      _
    $region11: #{tpu_custom_call.1} parent=1 // pred_check_branch
      %42 = sbr.rel (0) target = $region13
    $region12: #{tpu_custom_call.1} parent=1 // pred_region
      _
    $region13: #{tpu_custom_call.1} parent=1 // pred_fallthru
      _
    // Predicated region
    $region14: #{tpu_custom_call.1} parent=1 // pred_check
      _
    $region15: #{tpu_custom_call.1} parent=1 // pred_check_branch
      %44 = sbr.rel (0) target = $region17
    $region16: #{tpu_custom_call.1} parent=1 // pred_region
      %s46 = ssub.s32 512, 512
      %47 = vsyncadd [#allocation6], %s46
      %s48 = sshll.u32 [#allocation7], 4
      %s49 = int_to_ptr.vmem [resolvable:$true] %s48
      %54 = dma.hbm_to_vmem [thread:$0]  %s3, 512, %s49, [#allocation6], 128, 128, 8
    $region17: #{tpu_custom_call.1} parent=1 // pred_fallthru
      _
    // Predicated region
    $region18: #{tpu_custom_call.1} parent=1 // pred_check
      _
    $region19: #{tpu_custom_call.1} parent=1 // pred_check_branch
      %56 = sbr.rel (0) target = $region21
    $region20: #{tpu_custom_call.1} parent=1 // pred_region
      _
    $region21: #{tpu_custom_call.1} parent=1 // pred_fallthru
      _
    // Predicated region
    $region22: #{tpu_custom_call.1} parent=1 // pred_check
      _
    $region23: #{tpu_custom_call.1} parent=1 // pred_check_branch
      %58 = sbr.rel (0) target = $region25
    $region24: #{tpu_custom_call.1} parent=1 // pred_region
      _
    $region25: #{tpu_custom_call.1} parent=1 // pred_fallthru
      _
    // Predicated region
    $region26: #{tpu_custom_call.1} parent=1 // pred_check
      _
    $region27: #{tpu_custom_call.1} parent=1 // pred_check_branch
      %60 = sbr.rel (0) target = $region29
    $region28: #{tpu_custom_call.1} parent=1 // pred_region
      %s62 = ssub.s32 4096, 4096
      %63 = vsyncadd [#allocation9], %s62
      %s64 = sshll.u32 [#allocation8], 4
      %s65 = int_to_ptr.vmem [resolvable:$true] %s64
      %70 = dma.hbm_to_vmem [thread:$0]  %s6, 4096, %s65, [#allocation9], 128, 128, 8
    $region29: #{tpu_custom_call.1} parent=1 // pred_fallthru
      _
    // Predicated region
    $region30: #{tpu_custom_call.1} parent=1 // pred_check
      _
    $region31: #{tpu_custom_call.1} parent=1 // pred_check_branch
      %72 = sbr.rel (0) target = $region33
    $region32: #{tpu_custom_call.1} parent=1 // pred_region
      %73 = dma.done [#allocation3], 128
    $region33: #{tpu_custom_call.1} parent=1 // pred_fallthru
      _
    // Predicated region
    $region34: #{tpu_custom_call.1} parent=1 // pred_check
      _
    $region35: #{tpu_custom_call.1} parent=1 // pred_check_branch
      %75 = sbr.rel (0) target = $region37
    $region36: #{tpu_custom_call.1} parent=1 // pred_region
      %76 = dma.done [#allocation6], 1024
    $region37: #{tpu_custom_call.1} parent=1 // pred_fallthru
      _
    // Predicated region
    $region38: #{tpu_custom_call.1} parent=1 // pred_check
      _
    $region39: #{tpu_custom_call.1} parent=1 // pred_check_branch
      %78 = sbr.rel (0) target = $region41
    $region40: #{tpu_custom_call.1} parent=1 // pred_region
      %79 = dma.done [#allocation6], 512
    $region41: #{tpu_custom_call.1} parent=1 // pred_fallthru
      _
    // Predicated region
    $region42: #{tpu_custom_call.1} parent=1 // pred_check
      _
    $region43: #{tpu_custom_call.1} parent=1 // pred_check_branch
      %81 = sbr.rel (0) target = $region45
    $region44: #{tpu_custom_call.1} parent=1 // pred_region
      %82 = dma.done [#allocation9], 4096
    $region45: #{tpu_custom_call.1} parent=1 // pred_fallthru
      _
    %v83 = vld [vmem:[#allocation2] sm:$0xff]
    %v84 = vld [vmem:[#allocation7] sm:$0xff]
    %v85 = vld [vmem:[#allocation7 + $0x8] sm:$0xff]
    %v86 = vld [vmem:[#allocation7 + $0x10] sm:$0xff]
    %v87 = vld [vmem:[#allocation7 + $0x18] sm:$0xff]
    %v88 = vld [vmem:[%s4] sm:$0x1]
    %v90 = vlaneseq
    %v91 = vshrl.u32 %v90, 7
    %v92 = vsub.s32 0, %v91
    %v93 = vrot.slane %v88, %v92
    %vm95 = vcmask 261120
    %v97 = vsel %vm95, %v83, 0
    %99 = vmatprep.subr.mxu0 0.0
    %100 = vmatpush1.msra.mxu0 0.0
    %101 = vmatprep.subr.mxu0 0.0
    %102 = vmatpush1.msra.mxu0 0.0
    %103 = vmatprep.subr.mxu0 0.0
    %104 = vmatpush1.msra.mxu0 0.0
    %105 = vmatprep.subr.mxu0 0.0
    %106 = vmatpush1.msra.mxu0 0.0
    %107 = vmatprep.subr.mxu0 0.0
    %108 = vmatpush1.msra.mxu0 0.0
    %109 = vmatprep.subr.mxu0 0.0
    %110 = vmatpush1.msra.mxu0 0.0
    %111 = vmatprep.subr.mxu0 0.0
    %112 = vmatpush1.msra.mxu0 0.0
    %113 = vmatprep.subr.mxu0 0.0
    %114 = vmatpush1.msra.mxu0 0.0
    %115 = vmatprep.subr.mxu0 0.0
    %116 = vmatpush1.msra.mxu0 0.0
    %117 = vmatprep.subr.mxu0 0.0
    %118 = vmatpush1.msra.mxu0 0.0
    %119 = vmatprep.subr.mxu0 0.0
    %120 = vmatpush1.msra.mxu0 0.0
    %121 = vmatprep.subr.mxu0 0.0
    %122 = vmatpush1.msra.mxu0 0.0
    %123 = vmatprep.subr.mxu0 0.0
    %124 = vmatpush1.msra.mxu0 %v87
    %125 = vmatprep.subr.mxu0 0.0
    %126 = vmatpush1.msra.mxu0 %v86
    %127 = vmatprep.subr.mxu0 0.0
    %128 = vmatpush1.msra.mxu0 %v85
    %129 = vmatprep.subr.mxu0 0.0
    %130 = vmatpush1.msra.mxu0 %v84
    %131 = vmatprep.subr.mxu0 0.0
    %132 = vmatpush2.msra.mxu0 0.0
    %133 = vmatprep.subr.mxu0 0.0
    %134 = vmatpush2.msra.mxu0 0.0
    %135 = vmatprep.subr.mxu0 0.0
    %136 = vmatpush2.msra.mxu0 0.0
    %137 = vmatprep.subr.mxu0 0.0
    %138 = vmatpush2.msra.mxu0 0.0
    %139 = vmatprep.subr.mxu0 0.0
    %140 = vmatpush2.msra.mxu0 0.0
    %141 = vmatprep.subr.mxu0 0.0
    %142 = vmatpush2.msra.mxu0 0.0
    %143 = vmatprep.subr.mxu0 0.0
    %144 = vmatpush2.msra.mxu0 0.0
    %145 = vmatprep.subr.mxu0 0.0
    %146 = vmatpush2.msra.mxu0 0.0
    %147 = vmatprep.subr.mxu0 0.0
    %148 = vmatpush2.msra.mxu0 0.0
    %149 = vmatprep.subr.mxu0 0.0
    %150 = vmatpush2.msra.mxu0 0.0
    %151 = vmatprep.subr.mxu0 0.0
    %152 = vmatpush2.msra.mxu0 0.0
    %153 = vmatprep.subr.mxu0 0.0
    %154 = vmatpush2.msra.mxu0 0.0
    %155 = vmatprep.subr.mxu0 0.0
    %156 = vmatpush2.msra.mxu0 0.0
    %157 = vmatprep.subr.mxu0 0.0
    %158 = vmatpush2.msra.mxu0 0.0
    %159 = vmatprep.subr.mxu0 0.0
    %160 = vmatpush2.msra.mxu0 0.0
    %161 = vmatprep.subr.mxu0 0.0
    %162 = vmatpush2.msra.mxu0 0.0
    %163 = vmatprep.mubr.f32.mxu0 0.0
    %164 = vmatmul.mubr.f32.gmra.mxu0 %v97
    %v165 = vpop.f32.mrf.mxu0
    %v166 = vadd.f32 %v93, %v165
    %v167 = vpop.f32.mrf.mxu0
    %168 = vdwg.mxu0
    %169 = vmax.xlane.f32.xlu0 %v166
    %v170 = vpop.xlane.xlu0 %169
    %v171 = vsub.f32 %v166, %v170
    %v172 = vmul.f32 %v171, 1.442695
    %v173 = vpow.pop %v172
    %174 = vadd.xlane.f32.xlu0 %v173
    %v175 = vpop.xlane.xlu0 %174
    %v176 = vrcp.pop %v175
    %v177 = vmul.f32 %v173, %v176
    %v178 = vrot.slane %v177, 4
    %v179 = vadd.f32 %v177, %v178
    %v180 = vrot.slane %v179, 2
    %v181 = vadd.f32 %v179, %v180
    %v182 = vrot.slane %v181, 1
    %v183 = vadd.f32 %v181, %v182
    %184 = vst [vmem:[#allocation11] sm:$0x1] %v183
    %v185 = vlaneseq
    %v186 = vand.u32 %v185, 127
    %vm187 = vcmp.eq.f32.partialorder %v166, %v170
    %v188 = vsel %vm187, %v186, 128
    %v189 = vand.u32 %v188, 65535
    %v190 = vshra.s32 %v188, 16
    %v191 = vcvt.s32.f32 %v189
    %v192 = vcvt.s32.f32 %v190
    %193 = vmin.xlane.f32.xlu0 %v192
    %v194 = vpop.xlane.xlu0 %193
    %vm195 = vcmp.eq.f32.partialorder %v192, %v194
    %v196 = vsel %vm195, %v191, inf
    %197 = vmin.xlane.f32.xlu0 %v196
    %v198 = vpop.xlane.xlu0 %197
    %v199 = vcvt.f32.s32 %v198
    %v200 = vcvt.f32.s32 %v194
    %v201 = vshll.u32 %v200, 16
    %v202 = vadd.s32 %v201, %v199
    %vm203 = vcmp.eq.s32.totalorder %v186, %v202
    %v204 = vsel %vm203, -inf, %v166
    %205 = vmax.xlane.f32.xlu0 %v204
    %v206 = vpop.xlane.xlu0 %205
    %vm207 = vcmp.eq.f32.partialorder %v204, %v206
    %v208 = vsel %vm207, %v186, 128
    %v209 = vand.u32 %v208, 65535
    %v210 = vshra.s32 %v208, 16
    %v211 = vcvt.s32.f32 %v209
    %v212 = vcvt.s32.f32 %v210
    %213 = vmin.xlane.f32.xlu0 %v212
    %v214 = vpop.xlane.xlu0 %213
    %vm215 = vcmp.eq.f32.partialorder %v212, %v214
    %v216 = vsel %vm215, %v211, inf
    %217 = vmin.xlane.f32.xlu0 %v216
    %v218 = vpop.xlane.xlu0 %217
    %v219 = vcvt.f32.s32 %v218
    %v220 = vcvt.f32.s32 %v214
    %v221 = vshll.u32 %v220, 16
    %v222 = vadd.s32 %v221, %v219
    %v223 = vsub.f32 %v206, %v170
    %v224 = vmul.f32 %v223, 1.442695
    %v225 = vpow.pop %v224
    %v226 = vadd.f32 %v225, 1.0
    %v227 = vrcp.pop %v226
    %v228 = vmul.f32 1.0, %v227
    %v229 = vmul.f32 %v225, %v228
    %v230 = vld [vmem:[#allocation5] sm:$0xff]
    %v231 = vld [vmem:[#allocation5 + $0x8] sm:$0xff]
    %v232 = vld [vmem:[#allocation5 + $0x10] sm:$0xff]
    %v233 = vld [vmem:[#allocation5 + $0x18] sm:$0xff]
    %v234 = vld [vmem:[#allocation5 + $0x20] sm:$0xff]
    %v235 = vld [vmem:[#allocation5 + $0x28] sm:$0xff]
    %v236 = vld [vmem:[#allocation5 + $0x30] sm:$0xff]
    %v237 = vld [vmem:[#allocation5 + $0x38] sm:$0xff]
    %v238 = vld [vmem:[%s2] sm:$0x3]
    %v240 = vlaneseq
    %v241 = vshrl.u32 %v240, 7
    %v242 = vsub.s32 0, %v241
    %v243 = vrot.slane %v238, %v242
    %v244 = vlaneseq
    %v245 = vshrl.u32 %v244, 7
    %v246 = vsub.s32 1, %v245
    %v247 = vrot.slane %v238, %v246
    %250 = vmatprep.subr.mxu0 0.0
    %251 = vmatpush1.msra.mxu0 0.0
    %252 = vmatprep.subr.mxu0 0.0
    %253 = vmatpush1.msra.mxu0 0.0
    %254 = vmatprep.subr.mxu0 0.0
    %255 = vmatpush1.msra.mxu0 0.0
    %256 = vmatprep.subr.mxu0 0.0
    %257 = vmatpush1.msra.mxu0 0.0
    %258 = vmatprep.subr.mxu0 0.0
    %259 = vmatpush1.msra.mxu0 0.0
    %260 = vmatprep.subr.mxu0 0.0
    %261 = vmatpush1.msra.mxu0 0.0
    %262 = vmatprep.subr.mxu0 0.0
    %263 = vmatpush1.msra.mxu0 0.0
    %264 = vmatprep.subr.mxu0 0.0
    %265 = vmatpush1.msra.mxu0 0.0
    %266 = vmatprep.subr.mxu0 0.0
    %267 = vmatpush1.msra.mxu0 0.0
    %268 = vmatprep.subr.mxu0 0.0
    %269 = vmatpush1.msra.mxu0 0.0
    %270 = vmatprep.subr.mxu0 0.0
    %271 = vmatpush1.msra.mxu0 0.0
    %272 = vmatprep.subr.mxu0 0.0
    %273 = vmatpush1.msra.mxu0 0.0
    %274 = vmatprep.subr.mxu0 %v237
    %275 = vmatpush1.msra.mxu0 %v236
    %276 = vmatprep.subr.mxu0 %v235
    %277 = vmatpush1.msra.mxu0 %v234
    %278 = vmatprep.subr.mxu0 %v233
    %279 = vmatpush1.msra.mxu0 %v232
    %280 = vmatprep.subr.mxu0 %v231
    %281 = vmatpush1.msra.mxu0 %v230
    %282 = vmatprep.subr.mxu0 0.0
    %283 = vmatpush2.msra.mxu0 0.0
    %284 = vmatprep.subr.mxu0 0.0
    %285 = vmatpush2.msra.mxu0 0.0
    %286 = vmatprep.subr.mxu0 0.0
    %287 = vmatpush2.msra.mxu0 0.0
    %288 = vmatprep.subr.mxu0 0.0
    %289 = vmatpush2.msra.mxu0 0.0
    %290 = vmatprep.subr.mxu0 0.0
    %291 = vmatpush2.msra.mxu0 0.0
    %292 = vmatprep.subr.mxu0 0.0
    %293 = vmatpush2.msra.mxu0 0.0
    %294 = vmatprep.subr.mxu0 0.0
    %295 = vmatpush2.msra.mxu0 0.0
    %296 = vmatprep.subr.mxu0 0.0
    %297 = vmatpush2.msra.mxu0 0.0
    %298 = vmatprep.subr.mxu0 0.0
    %299 = vmatpush2.msra.mxu0 0.0
    %300 = vmatprep.subr.mxu0 0.0
    %301 = vmatpush2.msra.mxu0 0.0
    %302 = vmatprep.subr.mxu0 0.0
    %303 = vmatpush2.msra.mxu0 0.0
    %304 = vmatprep.subr.mxu0 0.0
    %305 = vmatpush2.msra.mxu0 0.0
    %306 = vmatprep.subr.mxu0 0.0
    %307 = vmatpush2.msra.mxu0 0.0
    %308 = vmatprep.subr.mxu0 0.0
    %309 = vmatpush2.msra.mxu0 0.0
    %310 = vmatprep.subr.mxu0 0.0
    %311 = vmatpush2.msra.mxu0 0.0
    %312 = vmatprep.subr.mxu0 0.0
    %313 = vmatpush2.msra.mxu0 0.0
    %314 = vmatprep.mubr.f32.mxu0 0.0
    %315 = vmatmul.mubr.f32.gmra.mxu0 %v97
    %v316 = vpop.f32.mrf.mxu0
    %v317 = vadd.f32 %v243, %v316
    %v318 = vpop.f32.mrf.mxu0
    %v319 = vadd.f32 %v247, %v318
    %320 = vdwg.mxu0
    %v321 = vld [vmem:[%s5] sm:$0x3]
    %v322 = vlaneseq
    %v323 = vshrl.u32 %v322, 7
    %v324 = vsub.s32 0, %v323
    %v325 = vrot.slane %v321, %v324
    %v326 = vlaneseq
    %v327 = vshrl.u32 %v326, 7
    %v328 = vsub.s32 1, %v327
    %v329 = vrot.slane %v321, %v328
    %vm330 = vcmp.eq.s32.totalorder %v325, %v202
    %vm331 = vcmp.eq.s32.totalorder %v329, %v202
    %v332 = vsel %vm330, 1, 0
    %v333 = vsel %vm331, 1, 0
    %v334 = vcvt.s32.f32 %v332
    %v335 = vcvt.s32.f32 %v333
    %v336 = vmul.f32 %v228, %v334
    %v337 = vmul.f32 %v228, %v335
    %vm338 = vcmp.eq.s32.totalorder %v325, %v222
    %vm339 = vcmp.eq.s32.totalorder %v329, %v222
    %v340 = vsel %vm338, 1, 0
    %v341 = vsel %vm339, 1, 0
    %v342 = vcvt.s32.f32 %v340
    %v343 = vcvt.s32.f32 %v341
    %v344 = vmul.f32 %v229, %v342
    %v345 = vmul.f32 %v229, %v343
    %v346 = vadd.f32 %v336, %v344
    %v347 = vadd.f32 %v337, %v345
    %v348 = vmul.f32 %v317, %v346
    %v349 = vmul.f32 %v319, %v347
    %v350 = vld [vmem:[#allocation8] sm:$0xff]
    %v351 = vld [vmem:[#allocation8 + $0x8] sm:$0xff]
    %v352 = vld [vmem:[#allocation8 + $0x10] sm:$0xff]
    %v353 = vld [vmem:[#allocation8 + $0x18] sm:$0xff]
    %v354 = vld [vmem:[#allocation8 + $0x20] sm:$0xff]
    %v355 = vld [vmem:[#allocation8 + $0x28] sm:$0xff]
    %v356 = vld [vmem:[#allocation8 + $0x30] sm:$0xff]
    %v357 = vld [vmem:[#allocation8 + $0x38] sm:$0xff]
    %v358 = vld [vmem:[#allocation8 + $0x40] sm:$0xff]
    %v359 = vld [vmem:[#allocation8 + $0x48] sm:$0xff]
    %v360 = vld [vmem:[#allocation8 + $0x50] sm:$0xff]
    %v361 = vld [vmem:[#allocation8 + $0x58] sm:$0xff]
    %v362 = vld [vmem:[#allocation8 + $0x60] sm:$0xff]
    %v363 = vld [vmem:[#allocation8 + $0x68] sm:$0xff]
    %v364 = vld [vmem:[#allocation8 + $0x70] sm:$0xff]
    %v365 = vld [vmem:[#allocation8 + $0x78] sm:$0xff]
    %v366 = vld [vmem:[#allocation8 + $0x80] sm:$0xff]
    %v367 = vld [vmem:[#allocation8 + $0x88] sm:$0xff]
    %v368 = vld [vmem:[#allocation8 + $0x90] sm:$0xff]
    %v369 = vld [vmem:[#allocation8 + $0x98] sm:$0xff]
    %v370 = vld [vmem:[#allocation8 + $0xa0] sm:$0xff]
    %v371 = vld [vmem:[#allocation8 + $0xa8] sm:$0xff]
    %v372 = vld [vmem:[#allocation8 + $0xb0] sm:$0xff]
    %v373 = vld [vmem:[#allocation8 + $0xb8] sm:$0xff]
    %v374 = vld [vmem:[#allocation8 + $0xc0] sm:$0xff]
    %v375 = vld [vmem:[#allocation8 + $0xc8] sm:$0xff]
    %v376 = vld [vmem:[#allocation8 + $0xd0] sm:$0xff]
    %v377 = vld [vmem:[#allocation8 + $0xd8] sm:$0xff]
    %v378 = vld [vmem:[#allocation8 + $0xe0] sm:$0xff]
    %v379 = vld [vmem:[#allocation8 + $0xe8] sm:$0xff]
    %v380 = vld [vmem:[#allocation8 + $0xf0] sm:$0xff]
    %v381 = vld [vmem:[#allocation8 + $0xf8] sm:$0xff]
    %382 = vmatprep.subr.mxu0 0.0
    %383 = vmatpush1.msra.mxu0 %v365
    %384 = vmatprep.subr.mxu0 0.0
    %385 = vmatpush1.msra.mxu0 %v364
    %386 = vmatprep.subr.mxu0 0.0
    %387 = vmatpush1.msra.mxu0 %v363
    %388 = vmatprep.subr.mxu0 0.0
    %389 = vmatpush1.msra.mxu0 %v362
    %390 = vmatprep.subr.mxu0 0.0
    %391 = vmatpush1.msra.mxu0 %v361
    %392 = vmatprep.subr.mxu0 0.0
    %393 = vmatpush1.msra.mxu0 %v360
    %394 = vmatprep.subr.mxu0 0.0
    %395 = vmatpush1.msra.mxu0 %v359
    %396 = vmatprep.subr.mxu0 0.0
    %397 = vmatpush1.msra.mxu0 %v358
    %398 = vmatprep.subr.mxu0 0.0
    %399 = vmatpush1.msra.mxu0 %v357
    %400 = vmatprep.subr.mxu0 0.0
    %401 = vmatpush1.msra.mxu0 %v356
    %402 = vmatprep.subr.mxu0 0.0
    %403 = vmatpush1.msra.mxu0 %v355
    %404 = vmatprep.subr.mxu0 0.0
    %405 = vmatpush1.msra.mxu0 %v354
    %406 = vmatprep.subr.mxu0 0.0
    %407 = vmatpush1.msra.mxu0 %v353
    %408 = vmatprep.subr.mxu0 0.0
    %409 = vmatpush1.msra.mxu0 %v352
    %410 = vmatprep.subr.mxu0 0.0
    %411 = vmatpush1.msra.mxu0 %v351
    %412 = vmatprep.subr.mxu0 0.0
    %413 = vmatpush1.msra.mxu0 %v350
    %414 = vmatprep.subr.mxu0 0.0
    %415 = vmatpush2.msra.mxu0 %v381
    %416 = vmatprep.subr.mxu0 0.0
    %417 = vmatpush2.msra.mxu0 %v380
    %418 = vmatprep.subr.mxu0 0.0
    %419 = vmatpush2.msra.mxu0 %v379
    %420 = vmatprep.subr.mxu0 0.0
    %421 = vmatpush2.msra.mxu0 %v378
    %422 = vmatprep.subr.mxu0 0.0
    %423 = vmatpush2.msra.mxu0 %v377
    %424 = vmatprep.subr.mxu0 0.0
    %425 = vmatpush2.msra.mxu0 %v376
    %426 = vmatprep.subr.mxu0 0.0
    %427 = vmatpush2.msra.mxu0 %v375
    %428 = vmatprep.subr.mxu0 0.0
    %429 = vmatpush2.msra.mxu0 %v374
    %430 = vmatprep.subr.mxu0 0.0
    %431 = vmatpush2.msra.mxu0 %v373
    %432 = vmatprep.subr.mxu0 0.0
    %433 = vmatpush2.msra.mxu0 %v372
    %434 = vmatprep.subr.mxu0 0.0
    %435 = vmatpush2.msra.mxu0 %v371
    %436 = vmatprep.subr.mxu0 0.0
    %437 = vmatpush2.msra.mxu0 %v370
    %438 = vmatprep.subr.mxu0 0.0
    %439 = vmatpush2.msra.mxu0 %v369
    %440 = vmatprep.subr.mxu0 0.0
    %441 = vmatpush2.msra.mxu0 %v368
    %442 = vmatprep.subr.mxu0 0.0
    %443 = vmatpush2.msra.mxu0 %v367
    %444 = vmatprep.subr.mxu0 0.0
    %445 = vmatpush2.msra.mxu0 %v366
    %446 = vmatprep.mubr.f32.mxu0 %v349
    %447 = vmatmul.mubr.f32.gmra.mxu0 %v348
    %v448 = vpop.f32.mrf.mxu0
    %v449 = vadd.f32 0.0, %v448
    %v450 = vpop.f32.mrf.mxu0
    %451 = vdwg.mxu0
    %452 = vst [vmem:[#allocation10] sm:$0xff] %v449
    // Predicated region
    $region46: #{tpu_custom_call.1} parent=1 // pred_check
      _
    $region47: #{tpu_custom_call.1} parent=1 // pred_check_branch
      %454 = sbr.rel (0) target = $region49
    $region48: #{tpu_custom_call.1} parent=1 // pred_region
      %s456 = ssub.s32 128, 128
      %457 = vsyncadd [#allocation4], %s456
      %s459 = sshll.u32 [#allocation10], 4
      %s460 = int_to_ptr.vmem [resolvable:$true] %s459
      %462 = dma.vmem_to_hbm [thread:$0]  %s460, 128, %s7, [#allocation4]
    $region49: #{tpu_custom_call.1} parent=1 // pred_fallthru
      _
    // Predicated region
    $region50: #{tpu_custom_call.1} parent=1 // pred_check
      _
    $region51: #{tpu_custom_call.1} parent=1 // pred_check_branch
      %464 = sbr.rel (0) target = $region53
    $region52: #{tpu_custom_call.1} parent=1 // pred_region
      %s466 = ssub.s32 16, 16
      %467 = vsyncadd [#allocation12], %s466
      %s469 = sshll.u32 [#allocation11], 4
      %s470 = int_to_ptr.vmem [resolvable:$true] %s469
      %472 = dma.vmem_to_hbm [thread:$0]  %s470, 16, %s8, [#allocation12]
    $region53: #{tpu_custom_call.1} parent=1 // pred_fallthru
      _
    // Predicated region
    $region54: #{tpu_custom_call.1} parent=1 // pred_check
      _
    $region55: #{tpu_custom_call.1} parent=1 // pred_check_branch
      %474 = sbr.rel (0) target = $region57
    $region56: #{tpu_custom_call.1} parent=1 // pred_region
      %475 = dma.done [#allocation4], 128
    $region57: #{tpu_custom_call.1} parent=1 // pred_fallthru
      _
    // Predicated region
    $region58: #{tpu_custom_call.1} parent=1 // pred_check
      _
    $region59: #{tpu_custom_call.1} parent=1 // pred_check_branch
      %477 = sbr.rel (0) target = $region61
    $region60: #{tpu_custom_call.1} parent=1 // pred_region
      %478 = dma.done [#allocation12], 16
    $region61: #{tpu_custom_call.1} parent=1 // pred_fallthru
      _
    %479 = vsyncpa [#allocation3], 1
    %480 = vsyncpa [#allocation6], 1
    %481 = vsyncpa [#allocation9], 1
    %482 = vsyncpa [#allocation4], 1
    %483 = vsyncpa [#allocation12], 1

// kernel: tpu_custom_call.1
$region0: #{tpu_custom_call.1}
  #allocation0 [shape = 'u32[]', space=smem, size = 0x4, offset = 0x4, fixed_abs, tag = 'smem constant byte address 0x4 - core index']
  #allocation1 [shape = 'u32[144,128]{1,0:T(1,128)}', space=vmem, size = 0x12000, scoped, tag = 'internal scratch']
  %s0 = inlined_call_operand.hbm [shape: f32[8,32], index: 0, kind: input, shape index: {}]
  %s1 = inlined_call_operand.hbm [shape: f32[32,256], index: 1, kind: input, shape index: {}]
  %s2 = inlined_call_operand.vmem [shape: f32[1,256], index: 2, kind: input, shape index: {}]
  %s3 = inlined_call_operand.hbm [shape: f32[32,128], index: 3, kind: input, shape index: {}]
  %s4 = inlined_call_operand.vmem [shape: f32[1,128], index: 4, kind: input, shape index: {}]
  %s5 = inlined_call_operand.vmem [shape: s32[1,256], index: 5, kind: input, shape index: {}]
  %s6 = inlined_call_operand.hbm [shape: f32[256,128], index: 6, kind: input, shape index: {}]
  %s7 = inlined_call_operand.hbm [shape: f32[8,128], index: 7, kind: output, shape index: {0}]
  %s8 = inlined_call_operand.hbm [shape: f32[1,1,128], index: 8, kind: output, shape index: {1}]
  %9 = xla_tuple %s7, %s8
  %s10 = sld [smem:[#allocation0]]
  $region62: #{tpu_custom_call.1} parent=0
    _
  %s12 = ssub.s32 1, %s10
  %s13 = scalar_select 0, %s12, %s10
  $region1: #{tpu_custom_call.1} parent=0
    #allocation2 [shape = 'u8[4096]{0}', space=vmem, size = 0x1000, scoped, tag = 'input window, operand 0, single buffered']
    #allocation3 [shape = 's32[1]{0}', space=sflag, size = 0x4, scoped, tag = 'scoped memory for tpu_custom_call.1']
    #allocation4 [shape = 's32[1]{0}', space=sflag, size = 0x4, scoped, tag = 'scoped memory for tpu_custom_call.1']
    #allocation5 [shape = 'u8[32768]{0}', space=vmem, size = 0x8000, scoped, tag = 'input window, operand 1, single buffered']
    #allocation6 [shape = 's32[1]{0}', space=sflag, size = 0x4, scoped, tag = 'scoped memory for tpu_custom_call.1']
    #allocation7 [shape = 'u8[16384]{0}', space=vmem, size = 0x4000, scoped, tag = 'input window, operand 3, single buffered']
    #allocation8 [shape = 'u8[131072]{0}', space=vmem, size = 0x20000, scoped, tag = 'input window, operand 6, single buffered']
    #allocation9 [shape = 's32[1]{0}', space=sflag, size = 0x4, scoped, tag = 'scoped memory for tpu_custom_call.1']
    #allocation10 [shape = 'u8[4096]{0}', space=vmem, size = 0x1000, scoped, tag = 'output window, operand 0, single buffered']
    #allocation11 [shape = 'u8[512]{0}', space=vmem, size = 0x400, scoped, tag = 'output window, operand 1, single buffered']
    #allocation12 [shape = 's32[1]{0}', space=sflag, size = 0x4, scoped, tag = 'scoped memory for tpu_custom_call.1']
    %14 = vsyncpa [#allocation3], 0
    %15 = vsyncpa [#allocation6], 0
    %16 = vsyncpa [#allocation9], 0
    %17 = vsyncpa [#allocation4], 0
    %18 = vsyncpa [#allocation12], 0
    // Predicated region
    $region2: #{tpu_custom_call.1} parent=1 // pred_check
      _
    $region3: #{tpu_custom_call.1} parent=1 // pred_check_branch
      %20 = sbr.rel (0) target = $region5
    $region4: #{tpu_custom_call.1} parent=1 // pred_region
      %s22 = ssub.s32 128, 128
      %23 = vsyncadd [#allocation3], %s22
      %s25 = sshll.u32 [#allocation2], 4
      %s26 = int_to_ptr.vmem [resolvable:$true] %s25
      %28 = dma.hbm_to_vmem [thread:$0]  %s0, 128, %s26, [#allocation3]
    $region5: #{tpu_custom_call.1} parent=1 // pred_fallthru
      _
    // Predicated region
    $region6: #{tpu_custom_call.1} parent=1 // pred_check
      _
    $region7: #{tpu_custom_call.1} parent=1 // pred_check_branch
      %30 = sbr.rel (0) target = $region9
    $region8: #{tpu_custom_call.1} parent=1 // pred_region
      %s32 = ssub.s32 1024, 1024
      %33 = vsyncadd [#allocation6], %s32
      %s34 = sshll.u32 [#allocation5], 4
      %s35 = int_to_ptr.vmem [resolvable:$true] %s34
      %40 = dma.hbm_to_vmem [thread:$0]  %s1, 1024, %s35, [#allocation6], 256, 256, 16
    $region9: #{tpu_custom_call.1} parent=1 // pred_fallthru
      _
    // Predicated region
    $region10: #{tpu_custom_call.1} parent=1 // pred_check
      _
    $region11: #{tpu_custom_call.1} parent=1 // pred_check_branch
      %42 = sbr.rel (0) target = $region13
    $region12: #{tpu_custom_call.1} parent=1 // pred_region
      _
    $region13: #{tpu_custom_call.1} parent=1 // pred_fallthru
      _
    // Predicated region
    $region14: #{tpu_custom_call.1} parent=1 // pred_check
      _
    $region15: #{tpu_custom_call.1} parent=1 // pred_check_branch
      %44 = sbr.rel (0) target = $region17
    $region16: #{tpu_custom_call.1} parent=1 // pred_region
      %s46 = ssub.s32 512, 512
      %47 = vsyncadd [#allocation6], %s46
      %s48 = sshll.u32 [#allocation7], 4
      %s49 = int_to_ptr.vmem [resolvable:$true] %s48
      %54 = dma.hbm_to_vmem [thread:$0]  %s3, 512, %s49, [#allocation6], 128, 128, 8
    $region17: #{tpu_custom_call.1} parent=1 // pred_fallthru
      _
    // Predicated region
    $region18: #{tpu_custom_call.1} parent=1 // pred_check
      _
    $region19: #{tpu_custom_call.1} parent=1 // pred_check_branch
      %56 = sbr.rel (0) target = $region21
    $region20: #{tpu_custom_call.1} parent=1 // pred_region
      _
    $region21: #{tpu_custom_call.1} parent=1 // pred_fallthru
      _
    // Predicated region
    $region22: #{tpu_custom_call.1} parent=1 // pred_check
      _
    $region23: #{tpu_custom_call.1} parent=1 // pred_check_branch
      %58 = sbr.rel (0) target = $region25
    $region24: #{tpu_custom_call.1} parent=1 // pred_region
      _
    $region25: #{tpu_custom_call.1} parent=1 // pred_fallthru
      _
    // Predicated region
    $region26: #{tpu_custom_call.1} parent=1 // pred_check
      _
    $region27: #{tpu_custom_call.1} parent=1 // pred_check_branch
      %60 = sbr.rel (0) target = $region29
    $region28: #{tpu_custom_call.1} parent=1 // pred_region
      %s62 = ssub.s32 4096, 4096
      %63 = vsyncadd [#allocation9], %s62
      %s64 = sshll.u32 [#allocation8], 4
      %s65 = int_to_ptr.vmem [resolvable:$true] %s64
      %70 = dma.hbm_to_vmem [thread:$0]  %s6, 4096, %s65, [#allocation9], 128, 128, 8
    $region29: #{tpu_custom_call.1} parent=1 // pred_fallthru
      _
    // Predicated region
    $region30: #{tpu_custom_call.1} parent=1 // pred_check
      _
    $region31: #{tpu_custom_call.1} parent=1 // pred_check_branch
      %72 = sbr.rel (0) target = $region33
    $region32: #{tpu_custom_call.1} parent=1 // pred_region
      %73 = dma.done [#allocation3], 128
    $region33: #{tpu_custom_call.1} parent=1 // pred_fallthru
      _
    // Predicated region
    $region34: #{tpu_custom_call.1} parent=1 // pred_check
      _
    $region35: #{tpu_custom_call.1} parent=1 // pred_check_branch
      %75 = sbr.rel (0) target = $region37
    $region36: #{tpu_custom_call.1} parent=1 // pred_region
      %76 = dma.done [#allocation6], 1024
    $region37: #{tpu_custom_call.1} parent=1 // pred_fallthru
      _
    // Predicated region
    $region38: #{tpu_custom_call.1} parent=1 // pred_check
      _
    $region39: #{tpu_custom_call.1} parent=1 // pred_check_branch
      %78 = sbr.rel (0) target = $region41
    $region40: #{tpu_custom_call.1} parent=1 // pred_region
      %79 = dma.done [#allocation6], 512
    $region41: #{tpu_custom_call.1} parent=1 // pred_fallthru
      _
    // Predicated region
    $region42: #{tpu_custom_call.1} parent=1 // pred_check
      _
    $region43: #{tpu_custom_call.1} parent=1 // pred_check_branch
      %81 = sbr.rel (0) target = $region45
    $region44: #{tpu_custom_call.1} parent=1 // pred_region
      %82 = dma.done [#allocation9], 4096
    $region45: #{tpu_custom_call.1} parent=1 // pred_fallthru
      _
    %v83 = vld [vmem:[#allocation2] sm:$0xff]
    %v84 = vld [vmem:[#allocation7] sm:$0xff]
    %v85 = vld [vmem:[#allocation7 + $0x8] sm:$0xff]
    %v86 = vld [vmem:[#allocation7 + $0x10] sm:$0xff]
    %v87 = vld [vmem:[#allocation7 + $0x18] sm:$0xff]
    %v88 = vld [vmem:[%s4] sm:$0x1]
    %v90 = vlaneseq
    %v91 = vshrl.u32 %v90, 7
    %v92 = vsub.s32 0, %v91
    %v93 = vrot.slane %v88, %v92
    %vm95 = vcmask 261120
    %v97 = vsel %vm95, %v83, 0
    %99 = vmatprep.subr.mxu0 0.0
    %100 = vmatpush1.msra.mxu0 0.0
    %101 = vmatprep.subr.mxu0 0.0
    %102 = vmatpush1.msra.mxu0 0.0
    %103 = vmatprep.subr.mxu0 0.0
    %104 = vmatpush1.msra.mxu0 0.0
    %105 = vmatprep.subr.mxu0 0.0
    %106 = vmatpush1.msra.mxu0 0.0
    %107 = vmatprep.subr.mxu0 0.0
    %108 = vmatpush1.msra.mxu0 0.0
    %109 = vmatprep.subr.mxu0 0.0
    %110 = vmatpush1.msra.mxu0 0.0
    %111 = vmatprep.subr.mxu0 0.0
    %112 = vmatpush1.msra.mxu0 0.0
    %113 = vmatprep.subr.mxu0 0.0
    %114 = vmatpush1.msra.mxu0 0.0
    %115 = vmatprep.subr.mxu0 0.0
    %116 = vmatpush1.msra.mxu0 0.0
    %117 = vmatprep.subr.mxu0 0.0
    %118 = vmatpush1.msra.mxu0 0.0
    %119 = vmatprep.subr.mxu0 0.0
    %120 = vmatpush1.msra.mxu0 0.0
    %121 = vmatprep.subr.mxu0 0.0
    %122 = vmatpush1.msra.mxu0 0.0
    %123 = vmatprep.subr.mxu0 0.0
    %124 = vmatpush1.msra.mxu0 %v87
    %125 = vmatprep.subr.mxu0 0.0
    %126 = vmatpush1.msra.mxu0 %v86
    %127 = vmatprep.subr.mxu0 0.0
    %128 = vmatpush1.msra.mxu0 %v85
    %129 = vmatprep.subr.mxu0 0.0
    %130 = vmatpush1.msra.mxu0 %v84
    %131 = vmatprep.subr.mxu0 0.0
    %132 = vmatpush2.msra.mxu0 0.0
    %133 = vmatprep.subr.mxu0 0.0
    %134 = vmatpush2.msra.mxu0 0.0
    %135 = vmatprep.subr.mxu0 0.0
    %136 = vmatpush2.msra.mxu0 0.0
    %137 = vmatprep.subr.mxu0 0.0
    %138 = vmatpush2.msra.mxu0 0.0
    %139 = vmatprep.subr.mxu0 0.0
    %140 = vmatpush2.msra.mxu0 0.0
    %141 = vmatprep.subr.mxu0 0.0
    %142 = vmatpush2.msra.mxu0 0.0
    %143 = vmatprep.subr.mxu0 0.0
    %144 = vmatpush2.msra.mxu0 0.0
    %145 = vmatprep.subr.mxu0 0.0
    %146 = vmatpush2.msra.mxu0 0.0
    %147 = vmatprep.subr.mxu0 0.0
    %148 = vmatpush2.msra.mxu0 0.0
    %149 = vmatprep.subr.mxu0 0.0
    %150 = vmatpush2.msra.mxu0 0.0
    %151 = vmatprep.subr.mxu0 0.0
    %152 = vmatpush2.msra.mxu0 0.0
    %153 = vmatprep.subr.mxu0 0.0
    %154 = vmatpush2.msra.mxu0 0.0
    %155 = vmatprep.subr.mxu0 0.0
    %156 = vmatpush2.msra.mxu0 0.0
    %157 = vmatprep.subr.mxu0 0.0
    %158 = vmatpush2.msra.mxu0 0.0
    %159 = vmatprep.subr.mxu0 0.0
    %160 = vmatpush2.msra.mxu0 0.0
    %161 = vmatprep.subr.mxu0 0.0
    %162 = vmatpush2.msra.mxu0 0.0
    %163 = vmatprep.mubr.f32.mxu0 0.0
    %164 = vmatmul.mubr.f32.gmra.mxu0 %v97
    %v165 = vpop.f32.mrf.mxu0
    %v166 = vadd.f32 %v93, %v165
    %v167 = vpop.f32.mrf.mxu0
    %168 = vdwg.mxu0
    %169 = vmax.xlane.f32.xlu0 %v166
    %v170 = vpop.xlane.xlu0 %169
    %v171 = vsub.f32 %v166, %v170
    %v172 = vmul.f32 %v171, 1.442695
    %v173 = vpow.pop %v172
    %174 = vadd.xlane.f32.xlu0 %v173
    %v175 = vpop.xlane.xlu0 %174
    %v176 = vrcp.pop %v175
    %v177 = vmul.f32 %v173, %v176
    %v178 = vrot.slane %v177, 4
    %v179 = vadd.f32 %v177, %v178
    %v180 = vrot.slane %v179, 2
    %v181 = vadd.f32 %v179, %v180
    %v182 = vrot.slane %v181, 1
    %v183 = vadd.f32 %v181, %v182
    %184 = vst [vmem:[#allocation11] sm:$0x1] %v183
    %v185 = vlaneseq
    %v186 = vand.u32 %v185, 127
    %vm187 = vcmp.eq.f32.partialorder %v166, %v170
    %v188 = vsel %vm187, %v186, 128
    %v189 = vand.u32 %v188, 65535
    %v190 = vshra.s32 %v188, 16
    %v191 = vcvt.s32.f32 %v189
    %v192 = vcvt.s32.f32 %v190
    %193 = vmin.xlane.f32.xlu0 %v192
    %v194 = vpop.xlane.xlu0 %193
    %vm195 = vcmp.eq.f32.partialorder %v192, %v194
    %v196 = vsel %vm195, %v191, inf
    %197 = vmin.xlane.f32.xlu0 %v196
    %v198 = vpop.xlane.xlu0 %197
    %v199 = vcvt.f32.s32 %v198
    %v200 = vcvt.f32.s32 %v194
    %v201 = vshll.u32 %v200, 16
    %v202 = vadd.s32 %v201, %v199
    %vm203 = vcmp.eq.s32.totalorder %v186, %v202
    %v204 = vsel %vm203, -inf, %v166
    %205 = vmax.xlane.f32.xlu0 %v204
    %v206 = vpop.xlane.xlu0 %205
    %vm207 = vcmp.eq.f32.partialorder %v204, %v206
    %v208 = vsel %vm207, %v186, 128
    %v209 = vand.u32 %v208, 65535
    %v210 = vshra.s32 %v208, 16
    %v211 = vcvt.s32.f32 %v209
    %v212 = vcvt.s32.f32 %v210
    %213 = vmin.xlane.f32.xlu0 %v212
    %v214 = vpop.xlane.xlu0 %213
    %vm215 = vcmp.eq.f32.partialorder %v212, %v214
    %v216 = vsel %vm215, %v211, inf
    %217 = vmin.xlane.f32.xlu0 %v216
    %v218 = vpop.xlane.xlu0 %217
    %v219 = vcvt.f32.s32 %v218
    %v220 = vcvt.f32.s32 %v214
    %v221 = vshll.u32 %v220, 16
    %v222 = vadd.s32 %v221, %v219
    %v223 = vsub.f32 %v206, %v170
    %v224 = vmul.f32 %v223, 1.442695
    %v225 = vpow.pop %v224
    %v226 = vadd.f32 %v225, 1.0
    %v227 = vrcp.pop %v226
    %v228 = vmul.f32 1.0, %v227
    %v229 = vmul.f32 %v225, %v228
    %v230 = vld [vmem:[#allocation5] sm:$0xff]
    %v231 = vld [vmem:[#allocation5 + $0x8] sm:$0xff]
    %v232 = vld [vmem:[#allocation5 + $0x10] sm:$0xff]
    %v233 = vld [vmem:[#allocation5 + $0x18] sm:$0xff]
    %v234 = vld [vmem:[#allocation5 + $0x20] sm:$0xff]
    %v235 = vld [vmem:[#allocation5 + $0x28] sm:$0xff]
    %v236 = vld [vmem:[#allocation5 + $0x30] sm:$0xff]
    %v237 = vld [vmem:[#allocation5 + $0x38] sm:$0xff]
    %v238 = vld [vmem:[%s2] sm:$0x3]
    %v240 = vlaneseq
    %v241 = vshrl.u32 %v240, 7
    %v242 = vsub.s32 0, %v241
    %v243 = vrot.slane %v238, %v242
    %v244 = vlaneseq
    %v245 = vshrl.u32 %v244, 7
    %v246 = vsub.s32 1, %v245
    %v247 = vrot.slane %v238, %v246
    %250 = vmatprep.subr.mxu0 0.0
    %251 = vmatpush1.msra.mxu0 0.0
    %252 = vmatprep.subr.mxu0 0.0
    %253 = vmatpush1.msra.mxu0 0.0
    %254 = vmatprep.subr.mxu0 0.0
    %255 = vmatpush1.msra.mxu0 0.0
    %256 = vmatprep.subr.mxu0 0.0
    %257 = vmatpush1.msra.mxu0 0.0
    %258 = vmatprep.subr.mxu0 0.0
    %259 = vmatpush1.msra.mxu0 0.0
    %260 = vmatprep.subr.mxu0 0.0
    %261 = vmatpush1.msra.mxu0 0.0
    %262 = vmatprep.subr.mxu0 0.0
    %263 = vmatpush1.msra.mxu0 0.0
    %264 = vmatprep.subr.mxu0 0.0
    %265 = vmatpush1.msra.mxu0 0.0
    %266 = vmatprep.subr.mxu0 0.0
    %267 = vmatpush1.msra.mxu0 0.0
    %268 = vmatprep.subr.mxu0 0.0
    %269 = vmatpush1.msra.mxu0 0.0
    %270 = vmatprep.subr.mxu0 0.0
    %271 = vmatpush1.msra.mxu0 0.0
    %272 = vmatprep.subr.mxu0 0.0
    %273 = vmatpush1.msra.mxu0 0.0
    %274 = vmatprep.subr.mxu0 %v237
    %275 = vmatpush1.msra.mxu0 %v236
    %276 = vmatprep.subr.mxu0 %v235
    %277 = vmatpush1.msra.mxu0 %v234
    %278 = vmatprep.subr.mxu0 %v233
    %279 = vmatpush1.msra.mxu0 %v232
    %280 = vmatprep.subr.mxu0 %v231
    %281 = vmatpush1.msra.mxu0 %v230
    %282 = vmatprep.subr.mxu0 0.0
    %283 = vmatpush2.msra.mxu0 0.0
    %284 = vmatprep.subr.mxu0 0.0
    %285 = vmatpush2.msra.mxu0 0.0
    %286 = vmatprep.subr.mxu0 0.0
    %287 = vmatpush2.msra.mxu0 0.0
    %288 = vmatprep.subr.mxu0 0.0
    %289 = vmatpush2.msra.mxu0 0.0
    %290 = vmatprep.subr.mxu0 0.0
    %291 = vmatpush2.msra.mxu0 0.0
    %292 = vmatprep.subr.mxu0 0.0
    %293 = vmatpush2.msra.mxu0 0.0
    %294 = vmatprep.subr.mxu0 0.0
    %295 = vmatpush2.msra.mxu0 0.0
    %296 = vmatprep.subr.mxu0 0.0
    %297 = vmatpush2.msra.mxu0 0.0
    %298 = vmatprep.subr.mxu0 0.0
    %299 = vmatpush2.msra.mxu0 0.0
    %300 = vmatprep.subr.mxu0 0.0
    %301 = vmatpush2.msra.mxu0 0.0
    %302 = vmatprep.subr.mxu0 0.0
    %303 = vmatpush2.msra.mxu0 0.0
    %304 = vmatprep.subr.mxu0 0.0
    %305 = vmatpush2.msra.mxu0 0.0
    %306 = vmatprep.subr.mxu0 0.0
    %307 = vmatpush2.msra.mxu0 0.0
    %308 = vmatprep.subr.mxu0 0.0
    %309 = vmatpush2.msra.mxu0 0.0
    %310 = vmatprep.subr.mxu0 0.0
    %311 = vmatpush2.msra.mxu0 0.0
    %312 = vmatprep.subr.mxu0 0.0
    %313 = vmatpush2.msra.mxu0 0.0
    %314 = vmatprep.mubr.f32.mxu0 0.0
    %315 = vmatmul.mubr.f32.gmra.mxu0 %v97
    %v316 = vpop.f32.mrf.mxu0
    %v317 = vadd.f32 %v243, %v316
    %v318 = vpop.f32.mrf.mxu0
    %v319 = vadd.f32 %v247, %v318
    %320 = vdwg.mxu0
    %v321 = vld [vmem:[%s5] sm:$0x3]
    %v322 = vlaneseq
    %v323 = vshrl.u32 %v322, 7
    %v324 = vsub.s32 0, %v323
    %v325 = vrot.slane %v321, %v324
    %v326 = vlaneseq
    %v327 = vshrl.u32 %v326, 7
    %v328 = vsub.s32 1, %v327
    %v329 = vrot.slane %v321, %v328
    %vm330 = vcmp.eq.s32.totalorder %v325, %v202
    %vm331 = vcmp.eq.s32.totalorder %v329, %v202
    %v332 = vsel %vm330, 1, 0
    %v333 = vsel %vm331, 1, 0
    %v334 = vcvt.s32.f32 %v332
    %v335 = vcvt.s32.f32 %v333
    %v336 = vmul.f32 %v228, %v334
    %v337 = vmul.f32 %v228, %v335
    %vm338 = vcmp.eq.s32.totalorder %v325, %v222
    %vm339 = vcmp.eq.s32.totalorder %v329, %v222
    %v340 = vsel %vm338, 1, 0
    %v341 = vsel %vm339, 1, 0
    %v342 = vcvt.s32.f32 %v340
    %v343 = vcvt.s32.f32 %v341
    %v344 = vmul.f32 %v229, %v342
    %v345 = vmul.f32 %v229, %v343
    %v346 = vadd.f32 %v336, %v344
    %v347 = vadd.f32 %v337, %v345
    %v348 = vmul.f32 %v317, %v346
    %v349 = vmul.f32 %v319, %v347
    %v350 = vld [vmem:[#allocation8] sm:$0xff]
    %v351 = vld [vmem:[#allocation8 + $0x8] sm:$0xff]
    %v352 = vld [vmem:[#allocation8 + $0x10] sm:$0xff]
    %v353 = vld [vmem:[#allocation8 + $0x18] sm:$0xff]
    %v354 = vld [vmem:[#allocation8 + $0x20] sm:$0xff]
    %v355 = vld [vmem:[#allocation8 + $0x28] sm:$0xff]
    %v356 = vld [vmem:[#allocation8 + $0x30] sm:$0xff]
    %v357 = vld [vmem:[#allocation8 + $0x38] sm:$0xff]
    %v358 = vld [vmem:[#allocation8 + $0x40] sm:$0xff]
    %v359 = vld [vmem:[#allocation8 + $0x48] sm:$0xff]
    %v360 = vld [vmem:[#allocation8 + $0x50] sm:$0xff]
    %v361 = vld [vmem:[#allocation8 + $0x58] sm:$0xff]
    %v362 = vld [vmem:[#allocation8 + $0x60] sm:$0xff]
    %v363 = vld [vmem:[#allocation8 + $0x68] sm:$0xff]
    %v364 = vld [vmem:[#allocation8 + $0x70] sm:$0xff]
    %v365 = vld [vmem:[#allocation8 + $0x78] sm:$0xff]
    %v366 = vld [vmem:[#allocation8 + $0x80] sm:$0xff]
    %v367 = vld [vmem:[#allocation8 + $0x88] sm:$0xff]
    %v368 = vld [vmem:[#allocation8 + $0x90] sm:$0xff]
    %v369 = vld [vmem:[#allocation8 + $0x98] sm:$0xff]
    %v370 = vld [vmem:[#allocation8 + $0xa0] sm:$0xff]
    %v371 = vld [vmem:[#allocation8 + $0xa8] sm:$0xff]
    %v372 = vld [vmem:[#allocation8 + $0xb0] sm:$0xff]
    %v373 = vld [vmem:[#allocation8 + $0xb8] sm:$0xff]
    %v374 = vld [vmem:[#allocation8 + $0xc0] sm:$0xff]
    %v375 = vld [vmem:[#allocation8 + $0xc8] sm:$0xff]
    %v376 = vld [vmem:[#allocation8 + $0xd0] sm:$0xff]
    %v377 = vld [vmem:[#allocation8 + $0xd8] sm:$0xff]
    %v378 = vld [vmem:[#allocation8 + $0xe0] sm:$0xff]
    %v379 = vld [vmem:[#allocation8 + $0xe8] sm:$0xff]
    %v380 = vld [vmem:[#allocation8 + $0xf0] sm:$0xff]
    %v381 = vld [vmem:[#allocation8 + $0xf8] sm:$0xff]
    %382 = vmatprep.subr.mxu0 0.0
    %383 = vmatpush1.msra.mxu0 %v365
    %384 = vmatprep.subr.mxu0 0.0
    %385 = vmatpush1.msra.mxu0 %v364
    %386 = vmatprep.subr.mxu0 0.0
    %387 = vmatpush1.msra.mxu0 %v363
    %388 = vmatprep.subr.mxu0 0.0
    %389 = vmatpush1.msra.mxu0 %v362
    %390 = vmatprep.subr.mxu0 0.0
    %391 = vmatpush1.msra.mxu0 %v361
    %392 = vmatprep.subr.mxu0 0.0
    %393 = vmatpush1.msra.mxu0 %v360
    %394 = vmatprep.subr.mxu0 0.0
    %395 = vmatpush1.msra.mxu0 %v359
    %396 = vmatprep.subr.mxu0 0.0
    %397 = vmatpush1.msra.mxu0 %v358
    %398 = vmatprep.subr.mxu0 0.0
    %399 = vmatpush1.msra.mxu0 %v357
    %400 = vmatprep.subr.mxu0 0.0
    %401 = vmatpush1.msra.mxu0 %v356
    %402 = vmatprep.subr.mxu0 0.0
    %403 = vmatpush1.msra.mxu0 %v355
    %404 = vmatprep.subr.mxu0 0.0
    %405 = vmatpush1.msra.mxu0 %v354
    %406 = vmatprep.subr.mxu0 0.0
    %407 = vmatpush1.msra.mxu0 %v353
    %408 = vmatprep.subr.mxu0 0.0
    %409 = vmatpush1.msra.mxu0 %v352
    %410 = vmatprep.subr.mxu0 0.0
    %411 = vmatpush1.msra.mxu0 %v351
    %412 = vmatprep.subr.mxu0 0.0
    %413 = vmatpush1.msra.mxu0 %v350
    %414 = vmatprep.subr.mxu0 0.0
    %415 = vmatpush2.msra.mxu0 %v381
    %416 = vmatprep.subr.mxu0 0.0
    %417 = vmatpush2.msra.mxu0 %v380
    %418 = vmatprep.subr.mxu0 0.0
    %419 = vmatpush2.msra.mxu0 %v379
    %420 = vmatprep.subr.mxu0 0.0
    %421 = vmatpush2.msra.mxu0 %v378
    %422 = vmatprep.subr.mxu0 0.0
    %423 = vmatpush2.msra.mxu0 %v377
    %424 = vmatprep.subr.mxu0 0.0
    %425 = vmatpush2.msra.mxu0 %v376
    %426 = vmatprep.subr.mxu0 0.0
    %427 = vmatpush2.msra.mxu0 %v375
    %428 = vmatprep.subr.mxu0 0.0
    %429 = vmatpush2.msra.mxu0 %v374
    %430 = vmatprep.subr.mxu0 0.0
    %431 = vmatpush2.msra.mxu0 %v373
    %432 = vmatprep.subr.mxu0 0.0
    %433 = vmatpush2.msra.mxu0 %v372
    %434 = vmatprep.subr.mxu0 0.0
    %435 = vmatpush2.msra.mxu0 %v371
    %436 = vmatprep.subr.mxu0 0.0
    %437 = vmatpush2.msra.mxu0 %v370
    %438 = vmatprep.subr.mxu0 0.0
    %439 = vmatpush2.msra.mxu0 %v369
    %440 = vmatprep.subr.mxu0 0.0
    %441 = vmatpush2.msra.mxu0 %v368
    %442 = vmatprep.subr.mxu0 0.0
    %443 = vmatpush2.msra.mxu0 %v367
    %444 = vmatprep.subr.mxu0 0.0
    %445 = vmatpush2.msra.mxu0 %v366
    %446 = vmatprep.mubr.f32.mxu0 %v349
    %447 = vmatmul.mubr.f32.gmra.mxu0 %v348
    %v448 = vpop.f32.mrf.mxu0
    %v449 = vadd.f32 0.0, %v448
    %v450 = vpop.f32.mrf.mxu0
    %451 = vdwg.mxu0
    %452 = vst [vmem:[#allocation10] sm:$0xff] %v449
    // Predicated region
    $region46: #{tpu_custom_call.1} parent=1 // pred_check
      _
    $region47: #{tpu_custom_call.1} parent=1 // pred_check_branch
      %454 = sbr.rel (0) target = $region49
    $region48: #{tpu_custom_call.1} parent=1 // pred_region
      %s456 = ssub.s32 128, 128
      %457 = vsyncadd [#allocation4], %s456
      %s459 = sshll.u32 [#allocation10], 4
      %s460 = int_to_ptr.vmem [resolvable:$true] %s459
      %462 = dma.vmem_to_hbm [thread:$0]  %s460, 128, %s7, [#allocation4]
    $region49: #{tpu_custom_call.1} parent=1 // pred_fallthru
      _
    // Predicated region
    $region50: #{tpu_custom_call.1} parent=1 // pred_check
      _
    $region51: #{tpu_custom_call.1} parent=1 // pred_check_branch
      %464 = sbr.rel (0) target = $region53
    $region52: #{tpu_custom_call.1} parent=1 // pred_region
      %s466 = ssub.s32 16, 16
      %467 = vsyncadd [#allocation12], %s466
      %s469 = sshll.u32 [#allocation11], 4
      %s470 = int_to_ptr.vmem [resolvable:$true] %s469
      %472 = dma.vmem_to_hbm [thread:$0]  %s470, 16, %s8, [#allocation12]
    $region53: #{tpu_custom_call.1} parent=1 // pred_fallthru
      _
    // Predicated region
    $region54: #{tpu_custom_call.1} parent=1 // pred_check
      _
    $region55: #{tpu_custom_call.1} parent=1 // pred_check_branch
      %474 = sbr.rel (0) target = $region57
    $region56: #{tpu_custom_call.1} parent=1 // pred_region
      %475 = dma.done [#allocation4], 128
    $region57: #{tpu_custom_call.1} parent=1 // pred_fallthru
      _
    // Predicated region
    $region58: #{tpu_custom_call.1} parent=1 // pred_check
      _
    $region59: #{tpu_custom_call.1} parent=1 // pred_check_branch
      %477 = sbr.rel (0) target = $region61
    $region60: #{tpu_custom_call.1} parent=1 // pred_region
      %478 = dma.done [#allocation12], 16
    $region61: #{tpu_custom_call.1} parent=1 // pred_fallthru
      _
    %479 = vsyncpa [#allocation3], 1
    %480 = vsyncpa [#allocation6], 1
    %481 = vsyncpa [#allocation9], 1
    %482 = vsyncpa [#allocation4], 1
    %483 = vsyncpa [#allocation12], 1

</llo_original>
